<compile_context>
chip_gen: v7x
topology: tpu7x:2x2x1
jax: 0.10.0
libtpu: 0.0.40
codegen_flags: <defaults>
</compile_context>

<pallas_src>
import functools

import jax
import jax.numpy as jnp
from jax.experimental import pallas as pl
from jax.experimental.pallas import tpu as pltpu


# ---------------------------------------------------------------------------
# Fused forward kernel (transposed layout: [features, nodes/edges])
# ---------------------------------------------------------------------------
def _gin_net_kernel(h_in_t_ref, adj_t_ref, srcdst_t_ref, ef_t_ref,
                    embed_w_t_ref, embed_b_ref,
                    gin_w_t_ref, gin_b_ref, gin_s2_ref, gin_t2_ref,
                    w1ab_t_ref, w1c_all_t_ref, b1_all_ref, w2_all_t_ref,
                    b2_sum_ref, o_ref, *, n_layers, hidden):
    H = hidden
    f32 = jnp.float32

    # --- node-side compute (small; recomputed per edge tile so the edge grid
    #     axis can stay "parallel" / core-replicated on v7x) -----------------
    h_t = (jnp.dot(embed_w_t_ref[...], h_in_t_ref[...],
                   preferred_element_type=f32) + embed_b_ref[...])        # [H, N]

    adj_t = adj_t_ref[...]                                                # [N, N]
    srcdst_t = srcdst_t_ref[...]                                          # [2N, TE]

    # Hoisted edge-feature projection for ALL (L+1) readout stages (b1 folded).
    ef_proj = (jnp.dot(w1c_all_t_ref[...], ef_t_ref[...],
                       preferred_element_type=f32) + b1_all_ref[...])     # [(L+1)H, TE]

    def stage(h_t, l):
        # Fused src|dst projection: one [2H,H]x[H,N] push instead of two.
        ab_t = jnp.dot(w1ab_t_ref[l], h_t, preferred_element_type=f32)    # [2H, N]
        # [a_t | b_t] along lanes -> single fused one-hot gather push.
        stacked_t = jnp.concatenate([ab_t[:H], ab_t[H:]], axis=1)         # [H, 2N]
        g_t = jnp.dot(stacked_t, srcdst_t, preferred_element_type=f32)    # [H, TE]
        return jnp.maximum(g_t + ef_proj[l * H:(l + 1) * H], 0.0)

    s_parts = [stage(h_t, 0)]
    for i in range(n_layers):                     # static unroll, L compile-time
        neigh_t = jnp.dot(h_t, adj_t, preferred_element_type=f32)         # sum aggr
        z = h_t + neigh_t                                                  # eps = 0
        z = (jnp.dot(gin_w_t_ref[i], z, preferred_element_type=f32)
             + gin_b_ref[i])                      # MLP with ApplyNodeFunc BN folded
        z = jnp.maximum(z, 0.0)                   # ApplyNodeFunc ReLU
        z = z * gin_s2_ref[i] + gin_t2_ref[i]     # GINLayer bn_node_h (folded, eval)
        z = jnp.maximum(z, 0.0)
        h_t = h_t + z                             # residual
        # TODO(synk): dropout is identity (eval mode); training dropout not done.
        s_parts.append(stage(h_t, i + 1))

    # Single stacked score projection + summed biases + final ReLU.
    s_all = jnp.concatenate(s_parts, axis=0)                               # [(L+1)H, TE]
    score = (jnp.dot(w2_all_t_ref[...], s_all, preferred_element_type=f32)
             + b2_sum_ref[...])                                            # [1, TE]
    o_ref[...] = jnp.maximum(score, 0.0).astype(o_ref.dtype)               # lane-dense store


def _resident(shape):
    """Full-array block that stays VMEM-resident across the edge grid."""
    nd = len(shape)
    return pl.BlockSpec(shape, lambda *g: (0,) * nd)


def gin_net_forward(params, src_oh, dst_oh, adj, h_nodes, efeat, n_layers,
                    tile_e=128):
    n_edges = src_oh.shape[0]
    n_nodes = adj.shape[0]
    H = params["embed_w"].shape[1]
    fdim = efeat.shape[1]
    L = n_layers
    two_n = 2 * n_nodes

    # --- host-side layout plumbing (transpose + weight packing, once) -------
    h_in_t = jnp.asarray(h_nodes, jnp.float32).T                           # [IN, N]
    adj_t = jnp.asarray(adj, jnp.float32).T                                # [N, N]
    srcdst_t = jnp.concatenate([src_oh, dst_oh], axis=1).astype(jnp.float32).T  # [2N, E]
    ef_t = jnp.asarray(efeat, jnp.float32).T                               # [F, E]

    embed_w_t = params["embed_w"].T                                        # [H, IN]
    embed_b = params["embed_b"].reshape(H, 1)                              # [H, 1]

    gin = params["gin"]
    gin_w_t = jnp.stack([(p["w"] * p["s1"][None, :]).T for p in gin])      # [L, H, H]
    gin_b = jnp.stack([(p["b"] * p["s1"] + p["t1"]).reshape(H, 1) for p in gin])
    gin_s2 = jnp.stack([p["s2"].reshape(H, 1) for p in gin])               # [L, H, 1]
    gin_t2 = jnp.stack([p["t2"].reshape(H, 1) for p in gin])               # [L, H, 1]

    pred = params["pred"]
    w1ab_t = jnp.stack(
        [jnp.concatenate([p["w1"][:H].T, p["w1"][H:2 * H].T], axis=0)
         for p in pred])                                                   # [L+1, 2H, H]
    w1c_all_t = jnp.concatenate([p["w1"][2 * H:].T for p in pred], axis=0)  # [(L+1)H, F]
    b1_all = jnp.concatenate([p["b1"].reshape(H, 1) for p in pred], axis=0)  # [(L+1)H, 1]
    w2_all_t = jnp.concatenate([p["w2"].T for p in pred], axis=1)          # [1, (L+1)H]
    b2_sum = sum(p["b2"] for p in pred).reshape(1, 1)                      # [1, 1]

    # --- edge-axis padding so output tiles are lane-dense multiples of 128 --
    if n_edges < tile_e:
        tile_e = n_edges
    e_pad = ((n_edges + tile_e - 1) // tile_e) * tile_e
    if e_pad != n_edges:
        srcdst_t = jnp.pad(srcdst_t, ((0, 0), (0, e_pad - n_edges)))
        ef_t = jnp.pad(ef_t, ((0, 0), (0, e_pad - n_edges)))

    grid = (e_pad // tile_e,)

    in_specs = [
        _resident(h_in_t.shape),                                   # node features
        _resident(adj_t.shape),                                    # adjacency
        pl.BlockSpec((two_n, tile_e), lambda t: (0, t)),           # src|dst one-hots
        pl.BlockSpec((fdim, tile_e), lambda t: (0, t)),            # edge features
        _resident(embed_w_t.shape),
        _resident(embed_b.shape),
        _resident(gin_w_t.shape),
        _resident(gin_b.shape),
        _resident(gin_s2.shape),
        _resident(gin_t2.shape),
        _resident(w1ab_t.shape),
        _resident(w1c_all_t.shape),
        _resident(b1_all.shape),
        _resident(w2_all_t.shape),
        _resident(b2_sum.shape),
    ]
    out_spec = pl.BlockSpec((1, tile_e), lambda t: (0, t))

    out = pl.pallas_call(
        functools.partial(_gin_net_kernel, n_layers=L, hidden=H),
        out_shape=jax.ShapeDtypeStruct((1, e_pad), jnp.float32),
        grid=grid,
        in_specs=in_specs,
        out_specs=out_spec,
        compiler_params=pltpu.CompilerParams(
            dimension_semantics=("parallel",),          # edge tiles split across cores
            vmem_limit_bytes=64 * 1024 * 1024),
    )(h_in_t, adj_t, srcdst_t, ef_t,
      embed_w_t, embed_b, gin_w_t, gin_b, gin_s2, gin_t2,
      w1ab_t, w1c_all_t, b1_all, w2_all_t, b2_sum)

    # Host-side layout plumbing back to the module's [E, 1] output.
    return out[0, :n_edges].reshape(n_edges, 1)


# ---------------------------------------------------------------------------
# Parameter construction (deterministic, eval-mode BN folded to scale/shift)
# ---------------------------------------------------------------------------
def _bn_fold(gamma, beta, mean, var, eps=1e-5):
    scale = gamma / jnp.sqrt(var + eps)
    shift = beta - mean * scale
    return scale, shift


def init_params(key, in_dim, hidden_dim, n_layers, edge_feat_dim):
    keys = iter(jax.random.split(key, 64))

    def lin(k, fan_in, fan_out):
        kw, kb = jax.random.split(k)
        bound = 1.0 / jnp.sqrt(fan_in)
        w = jax.random.uniform(kw, (fan_in, fan_out), jnp.float32, -bound, bound)
        b = jax.random.uniform(kb, (fan_out,), jnp.float32, -bound, bound)
        return w, b

    params = {}
    params["embed_w"], params["embed_b"] = lin(next(keys), in_dim, hidden_dim)
    # NOTE: self.neighbors Linear exists in __init__ but is unused in forward.

    params["gin"] = []
    for _ in range(n_layers):
        w, b = lin(next(keys), hidden_dim, hidden_dim)
        g1 = 1.0 + 0.1 * jax.random.normal(next(keys), (hidden_dim,), jnp.float32)
        b1 = 0.1 * jax.random.normal(next(keys), (hidden_dim,), jnp.float32)
        m1 = 0.05 * jax.random.normal(next(keys), (hidden_dim,), jnp.float32)
        v1 = 1.0 + 0.1 * jnp.abs(jax.random.normal(next(keys), (hidden_dim,), jnp.float32))
        g2 = 1.0 + 0.1 * jax.random.normal(next(keys), (hidden_dim,), jnp.float32)
        b2 = 0.1 * jax.random.normal(next(keys), (hidden_dim,), jnp.float32)
        m2 = 0.05 * jax.random.normal(next(keys), (hidden_dim,), jnp.float32)
        v2 = 1.0 + 0.1 * jnp.abs(jax.random.normal(next(keys), (hidden_dim,), jnp.float32))
        s1, t1 = _bn_fold(g1, b1, m1, v1)   # ApplyNodeFunc BN
        s2, t2 = _bn_fold(g2, b2, m2, v2)   # GINLayer bn_node_h
        params["gin"].append(dict(w=w, b=b, s1=s1, t1=t1, s2=s2, t2=t2))

    params["pred"] = []
    pred_in = 2 * hidden_dim + edge_feat_dim
    for _ in range(n_layers + 1):
        w1, b1 = lin(next(keys), pred_in, hidden_dim)
        w2, b2 = lin(next(keys), hidden_dim, 1)
        params["pred"].append(dict(w1=w1, b1=b1, w2=w2, b2=b2))
    return params


# ---------------------------------------------------------------------------
# Pure-JAX reference (original, unfolded math) for a correctness check
# ---------------------------------------------------------------------------
def reference_forward(params, src_oh, dst_oh, adj, h_in, efeat, n_layers):
    dot = functools.partial(jnp.dot, precision=jax.lax.Precision.HIGHEST)
    h = dot(h_in, params["embed_w"]) + params["embed_b"]

    def edge_pred(h, pp):
        e = jnp.concatenate([dot(src_oh, h), dot(dst_oh, h), efeat], axis=1)
        s = jnp.maximum(dot(e, pp["w1"]) + pp["b1"], 0.0)
        return dot(s, pp["w2"]) + pp["b2"]

    score = edge_pred(h, params["pred"][0])
    for i in range(n_layers):
        gp = params["gin"][i]
        z = h + dot(adj, h)
        z = dot(z, gp["w"]) + gp["b"]
        z = z * gp["s1"] + gp["t1"]
        z = jnp.maximum(z, 0.0)
        z = z * gp["s2"] + gp["t2"]
        z = jnp.maximum(z, 0.0)
        h = h + z
        score = score + edge_pred(h, params["pred"][i + 1])
    return jnp.maximum(score, 0.0)


# ---------------------------------------------------------------------------
# Main
# ---------------------------------------------------------------------------
if __name__ == "__main__":
    IN_DIM = 4
    HIDDEN = 32
    N_LAYERS = 2
    EDGE_FEAT = 2
    N_NODES = 64

    # Deterministic small graph: node i has out-edges to (i+1), (i+3), (i+7),
    # (i+11) mod N  ->  E = 256 edges = two lane-dense edge tiles of 128.
    offsets = (1, 3, 7, 11)
    src_ids, dst_ids = [], []
    for i in range(N_NODES):
        for o in offsets:
            src_ids.append(i)
            dst_ids.append((i + o) % N_NODES)
    src_ids = jnp.array(src_ids, jnp.int32)
    dst_ids = jnp.array(dst_ids, jnp.int32)
    N_EDGES = int(src_ids.shape[0])

    src_oh = jax.nn.one_hot(src_ids, N_NODES, dtype=jnp.float32)   # [E, N]
    dst_oh = jax.nn.one_hot(dst_ids, N_NODES, dtype=jnp.float32)   # [E, N]
    adj = dst_oh.T @ src_oh                                        # [N, N], adj[v,u]=#(u->v)

    key = jax.random.PRNGKey(0)
    k_h, k_e, k_p = jax.random.split(key, 3)
    h_nodes = jax.random.normal(k_h, (N_NODES, IN_DIM), jnp.float32)
    e_feat = jax.random.normal(k_e, (N_EDGES, EDGE_FEAT), jnp.float32)

    params = init_params(k_p, IN_DIM, HIDDEN, N_LAYERS, EDGE_FEAT)

    out = gin_net_forward(params, src_oh, dst_oh, adj, h_nodes, e_feat, N_LAYERS)
    out = jax.block_until_ready(out)

    ref = reference_forward(params, src_oh, dst_oh, adj, h_nodes, e_feat, N_LAYERS)

    assert out.shape == (N_EDGES, 1)
    assert bool(jnp.all(jnp.isfinite(out)))
    assert bool(jnp.allclose(out, ref, rtol=5e-3, atol=5e-3))
    print("KERNEL_OK")
</pallas_src>

<mosaic_0001>
module attributes {stable_mosaic.version = 11 : i64} {
  func.func @_gin_net_kernel(%arg0: i32, %arg1: memref<4x64xf32, #tpu.memory_space<vmem>>, %arg2: memref<64x64xf32, #tpu.memory_space<vmem>>, %arg3: memref<128x128xf32, #tpu.memory_space<vmem>>, %arg4: memref<2x128xf32, #tpu.memory_space<vmem>>, %arg5: memref<32x4xf32, #tpu.memory_space<vmem>>, %arg6: memref<32x1xf32, #tpu.memory_space<vmem>>, %arg7: memref<2x32x32xf32, #tpu.memory_space<vmem>>, %arg8: memref<2x32x1xf32, #tpu.memory_space<vmem>>, %arg9: memref<2x32x1xf32, #tpu.memory_space<vmem>>, %arg10: memref<2x32x1xf32, #tpu.memory_space<vmem>>, %arg11: memref<3x64x32xf32, #tpu.memory_space<vmem>>, %arg12: memref<96x2xf32, #tpu.memory_space<vmem>>, %arg13: memref<96x1xf32, #tpu.memory_space<vmem>>, %arg14: memref<1x96xf32, #tpu.memory_space<vmem>>, %arg15: memref<1x1xf32, #tpu.memory_space<vmem>>, %arg16: memref<1x128xf32, #tpu.memory_space<vmem>>) attributes {dimension_semantics = [#tpu.dimension_semantics<parallel>], iteration_bounds = array<i64: 2>, scalar_prefetch = 0 : i64, scratch_operands = 0 : i64, tpu.core_type = #tpu.core_type<tc>, window_params = [{pipeline_mode = #tpu.pipeline_mode<synchronous>, transform_indices = @transform_0, window_bounds = array<i64: 4, 64>}, {pipeline_mode = #tpu.pipeline_mode<synchronous>, transform_indices = @transform_1, window_bounds = array<i64: 64, 64>}, {transform_indices = @transform_2, window_bounds = array<i64: 128, 128>}, {transform_indices = @transform_3, window_bounds = array<i64: 2, 128>}, {pipeline_mode = #tpu.pipeline_mode<synchronous>, transform_indices = @transform_4, window_bounds = array<i64: 32, 4>}, {pipeline_mode = #tpu.pipeline_mode<synchronous>, transform_indices = @transform_5, window_bounds = array<i64: 32, 1>}, {pipeline_mode = #tpu.pipeline_mode<synchronous>, transform_indices = @transform_6, window_bounds = array<i64: 2, 32, 32>}, {pipeline_mode = #tpu.pipeline_mode<synchronous>, transform_indices = @transform_7, window_bounds = array<i64: 2, 32, 1>}, {pipeline_mode = #tpu.pipeline_mode<synchronous>, transform_indices = @transform_8, window_bounds = array<i64: 2, 32, 1>}, {pipeline_mode = #tpu.pipeline_mode<synchronous>, transform_indices = @transform_9, window_bounds = array<i64: 2, 32, 1>}, {pipeline_mode = #tpu.pipeline_mode<synchronous>, transform_indices = @transform_10, window_bounds = array<i64: 3, 64, 32>}, {pipeline_mode = #tpu.pipeline_mode<synchronous>, transform_indices = @transform_11, window_bounds = array<i64: 96, 2>}, {pipeline_mode = #tpu.pipeline_mode<synchronous>, transform_indices = @transform_12, window_bounds = array<i64: 96, 1>}, {pipeline_mode = #tpu.pipeline_mode<synchronous>, transform_indices = @transform_13, window_bounds = array<i64: 1, 96>}, {pipeline_mode = #tpu.pipeline_mode<synchronous>, transform_indices = @transform_14, window_bounds = array<i64: 1, 1>}, {transform_indices = @transform_15, window_bounds = array<i64: 1, 128>}]} {
    %c0 = arith.constant 0 : index
    %c0_0 = arith.constant 0 : index
    %0 = vector.load %arg5[%c0, %c0_0] : memref<32x4xf32, #tpu.memory_space<vmem>>, vector<32x4xf32>
    %c0_1 = arith.constant 0 : index
    %c0_2 = arith.constant 0 : index
    %1 = vector.load %arg1[%c0_1, %c0_2] : memref<4x64xf32, #tpu.memory_space<vmem>>, vector<4x64xf32>
    %cst = arith.constant dense<0.000000e+00> : vector<32x64xf32>
    %2 = tpu.matmul %0, %1, %cst {dimension_numbers = #tpu.dot_dimension_numbers<[1], [0], [0], [1], [0, 0, 1, 1], [], []>} : vector<32x4xf32>, vector<4x64xf32>, vector<32x64xf32> -> vector<32x64xf32>
    %c0_3 = arith.constant 0 : index
    %c0_4 = arith.constant 0 : index
    %3 = vector.load %arg6[%c0_3, %c0_4] : memref<32x1xf32, #tpu.memory_space<vmem>>, vector<32x1xf32>
    %4 = vector.broadcast %3 : vector<32x1xf32> to vector<32x64xf32>
    %5 = arith.addf %2, %4 : vector<32x64xf32>
    %c0_5 = arith.constant 0 : index
    %c0_6 = arith.constant 0 : index
    %6 = vector.load %arg2[%c0_5, %c0_6] : memref<64x64xf32, #tpu.memory_space<vmem>>, vector<64x64xf32>
    %c0_7 = arith.constant 0 : index
    %c0_8 = arith.constant 0 : index
    %7 = vector.load %arg3[%c0_7, %c0_8] : memref<128x128xf32, #tpu.memory_space<vmem>>, vector<128x128xf32>
    %c0_9 = arith.constant 0 : index
    %c0_10 = arith.constant 0 : index
    %8 = vector.load %arg12[%c0_9, %c0_10] : memref<96x2xf32, #tpu.memory_space<vmem>>, vector<96x2xf32>
    %c0_11 = arith.constant 0 : index
    %c0_12 = arith.constant 0 : index
    %9 = vector.load %arg4[%c0_11, %c0_12] : memref<2x128xf32, #tpu.memory_space<vmem>>, vector<2x128xf32>
    %cst_13 = arith.constant dense<0.000000e+00> : vector<96x128xf32>
    %10 = tpu.matmul %8, %9, %cst_13 {dimension_numbers = #tpu.dot_dimension_numbers<[1], [0], [0], [1], [0, 0, 1, 1], [], []>} : vector<96x2xf32>, vector<2x128xf32>, vector<96x128xf32> -> vector<96x128xf32>
    %c0_14 = arith.constant 0 : index
    %c0_15 = arith.constant 0 : index
    %11 = vector.load %arg13[%c0_14, %c0_15] : memref<96x1xf32, #tpu.memory_space<vmem>>, vector<96x1xf32>
    %12 = vector.broadcast %11 : vector<96x1xf32> to vector<96x128xf32>
    %13 = arith.addf %10, %12 : vector<96x128xf32>
    %c0_16 = arith.constant 0 : index
    %c0_17 = arith.constant 0 : index
    %c0_18 = arith.constant 0 : index
    %14 = vector.load %arg11[%c0_16, %c0_17, %c0_18] : memref<3x64x32xf32, #tpu.memory_space<vmem>>, vector<1x64x32xf32>
    %15 = vector.shape_cast %14 : vector<1x64x32xf32> to vector<64x32xf32>
    %cst_19 = arith.constant dense<0.000000e+00> : vector<64x64xf32>
    %16 = tpu.matmul %15, %5, %cst_19 {dimension_numbers = #tpu.dot_dimension_numbers<[1], [0], [0], [1], [0, 0, 1, 1], [], []>} : vector<64x32xf32>, vector<32x64xf32>, vector<64x64xf32> -> vector<64x64xf32>
    %17 = vector.extract_strided_slice %16 {offsets = [0, 0], sizes = [32, 64], strides = [1, 1]} : vector<64x64xf32> to vector<32x64xf32>
    %18 = vector.extract_strided_slice %16 {offsets = [32, 0], sizes = [32, 64], strides = [1, 1]} : vector<64x64xf32> to vector<32x64xf32>
    %19 = tpu.concatenate %17, %18 in 1 : vector<32x64xf32>, vector<32x64xf32> -> vector<32x128xf32>
    %cst_20 = arith.constant dense<0.000000e+00> : vector<32x128xf32>
    %20 = tpu.matmul %19, %7, %cst_20 {dimension_numbers = #tpu.dot_dimension_numbers<[1], [0], [0], [1], [0, 0, 1, 1], [], []>} : vector<32x128xf32>, vector<128x128xf32>, vector<32x128xf32> -> vector<32x128xf32>
    %21 = vector.extract_strided_slice %13 {offsets = [0, 0], sizes = [32, 128], strides = [1, 1]} : vector<96x128xf32> to vector<32x128xf32>
    %22 = arith.addf %20, %21 : vector<32x128xf32>
    %cst_21 = arith.constant 0.000000e+00 : f32
    %23 = vector.broadcast %cst_21 : f32 to vector<32x128xf32>
    %24 = arith.maximumf %22, %23 : vector<32x128xf32>
    %cst_22 = arith.constant dense<0.000000e+00> : vector<32x64xf32>
    %25 = tpu.matmul %5, %6, %cst_22 {dimension_numbers = #tpu.dot_dimension_numbers<[1], [0], [0], [1], [0, 0, 1, 1], [], []>} : vector<32x64xf32>, vector<64x64xf32>, vector<32x64xf32> -> vector<32x64xf32>
    %26 = arith.addf %5, %25 : vector<32x64xf32>
    %c0_23 = arith.constant 0 : index
    %c0_24 = arith.constant 0 : index
    %c0_25 = arith.constant 0 : index
    %27 = vector.load %arg7[%c0_23, %c0_24, %c0_25] : memref<2x32x32xf32, #tpu.memory_space<vmem>>, vector<1x32x32xf32>
    %28 = vector.shape_cast %27 : vector<1x32x32xf32> to vector<32x32xf32>
    %cst_26 = arith.constant dense<0.000000e+00> : vector<32x64xf32>
    %29 = tpu.matmul %28, %26, %cst_26 {dimension_numbers = #tpu.dot_dimension_numbers<[1], [0], [0], [1], [0, 0, 1, 1], [], []>} : vector<32x32xf32>, vector<32x64xf32>, vector<32x64xf32> -> vector<32x64xf32>
    %c0_27 = arith.constant 0 : index
    %c0_28 = arith.constant 0 : index
    %c0_29 = arith.constant 0 : index
    %30 = vector.load %arg8[%c0_27, %c0_28, %c0_29] : memref<2x32x1xf32, #tpu.memory_space<vmem>>, vector<1x32x1xf32>
    %31 = vector.shape_cast %30 : vector<1x32x1xf32> to vector<32x1xf32>
    %32 = vector.broadcast %31 : vector<32x1xf32> to vector<32x64xf32>
    %33 = arith.addf %29, %32 : vector<32x64xf32>
    %cst_30 = arith.constant 0.000000e+00 : f32
    %34 = vector.broadcast %cst_30 : f32 to vector<32x64xf32>
    %35 = arith.maximumf %33, %34 : vector<32x64xf32>
    %c0_31 = arith.constant 0 : index
    %c0_32 = arith.constant 0 : index
    %c0_33 = arith.constant 0 : index
    %36 = vector.load %arg9[%c0_31, %c0_32, %c0_33] : memref<2x32x1xf32, #tpu.memory_space<vmem>>, vector<1x32x1xf32>
    %37 = vector.shape_cast %36 : vector<1x32x1xf32> to vector<32x1xf32>
    %38 = vector.broadcast %37 : vector<32x1xf32> to vector<32x64xf32>
    %39 = arith.mulf %35, %38 : vector<32x64xf32>
    %c0_34 = arith.constant 0 : index
    %c0_35 = arith.constant 0 : index
    %c0_36 = arith.constant 0 : index
    %40 = vector.load %arg10[%c0_34, %c0_35, %c0_36] : memref<2x32x1xf32, #tpu.memory_space<vmem>>, vector<1x32x1xf32>
    %41 = vector.shape_cast %40 : vector<1x32x1xf32> to vector<32x1xf32>
    %42 = vector.broadcast %41 : vector<32x1xf32> to vector<32x64xf32>
    %43 = arith.addf %39, %42 : vector<32x64xf32>
    %cst_37 = arith.constant 0.000000e+00 : f32
    %44 = vector.broadcast %cst_37 : f32 to vector<32x64xf32>
    %45 = arith.maximumf %43, %44 : vector<32x64xf32>
    %46 = arith.addf %5, %45 : vector<32x64xf32>
    %c1 = arith.constant 1 : index
    %c0_38 = arith.constant 0 : index
    %c0_39 = arith.constant 0 : index
    %47 = vector.load %arg11[%c1, %c0_38, %c0_39] : memref<3x64x32xf32, #tpu.memory_space<vmem>>, vector<1x64x32xf32>
    %48 = vector.shape_cast %47 : vector<1x64x32xf32> to vector<64x32xf32>
    %cst_40 = arith.constant dense<0.000000e+00> : vector<64x64xf32>
    %49 = tpu.matmul %48, %46, %cst_40 {dimension_numbers = #tpu.dot_dimension_numbers<[1], [0], [0], [1], [0, 0, 1, 1], [], []>} : vector<64x32xf32>, vector<32x64xf32>, vector<64x64xf32> -> vector<64x64xf32>
    %50 = vector.extract_strided_slice %49 {offsets = [0, 0], sizes = [32, 64], strides = [1, 1]} : vector<64x64xf32> to vector<32x64xf32>
    %51 = vector.extract_strided_slice %49 {offsets = [32, 0], sizes = [32, 64], strides = [1, 1]} : vector<64x64xf32> to vector<32x64xf32>
    %52 = tpu.concatenate %50, %51 in 1 : vector<32x64xf32>, vector<32x64xf32> -> vector<32x128xf32>
    %cst_41 = arith.constant dense<0.000000e+00> : vector<32x128xf32>
    %53 = tpu.matmul %52, %7, %cst_41 {dimension_numbers = #tpu.dot_dimension_numbers<[1], [0], [0], [1], [0, 0, 1, 1], [], []>} : vector<32x128xf32>, vector<128x128xf32>, vector<32x128xf32> -> vector<32x128xf32>
    %54 = vector.extract_strided_slice %13 {offsets = [32, 0], sizes = [32, 128], strides = [1, 1]} : vector<96x128xf32> to vector<32x128xf32>
    %55 = arith.addf %53, %54 : vector<32x128xf32>
    %cst_42 = arith.constant 0.000000e+00 : f32
    %56 = vector.broadcast %cst_42 : f32 to vector<32x128xf32>
    %57 = arith.maximumf %55, %56 : vector<32x128xf32>
    %cst_43 = arith.constant dense<0.000000e+00> : vector<32x64xf32>
    %58 = tpu.matmul %46, %6, %cst_43 {dimension_numbers = #tpu.dot_dimension_numbers<[1], [0], [0], [1], [0, 0, 1, 1], [], []>} : vector<32x64xf32>, vector<64x64xf32>, vector<32x64xf32> -> vector<32x64xf32>
    %59 = arith.addf %46, %58 : vector<32x64xf32>
    %c1_44 = arith.constant 1 : index
    %c0_45 = arith.constant 0 : index
    %c0_46 = arith.constant 0 : index
    %60 = vector.load %arg7[%c1_44, %c0_45, %c0_46] : memref<2x32x32xf32, #tpu.memory_space<vmem>>, vector<1x32x32xf32>
    %61 = vector.shape_cast %60 : vector<1x32x32xf32> to vector<32x32xf32>
    %cst_47 = arith.constant dense<0.000000e+00> : vector<32x64xf32>
    %62 = tpu.matmul %61, %59, %cst_47 {dimension_numbers = #tpu.dot_dimension_numbers<[1], [0], [0], [1], [0, 0, 1, 1], [], []>} : vector<32x32xf32>, vector<32x64xf32>, vector<32x64xf32> -> vector<32x64xf32>
    %c1_48 = arith.constant 1 : index
    %c0_49 = arith.constant 0 : index
    %c0_50 = arith.constant 0 : index
    %63 = vector.load %arg8[%c1_48, %c0_49, %c0_50] : memref<2x32x1xf32, #tpu.memory_space<vmem>>, vector<1x32x1xf32>
    %64 = vector.shape_cast %63 : vector<1x32x1xf32> to vector<32x1xf32>
    %65 = vector.broadcast %64 : vector<32x1xf32> to vector<32x64xf32>
    %66 = arith.addf %62, %65 : vector<32x64xf32>
    %cst_51 = arith.constant 0.000000e+00 : f32
    %67 = vector.broadcast %cst_51 : f32 to vector<32x64xf32>
    %68 = arith.maximumf %66, %67 : vector<32x64xf32>
    %c1_52 = arith.constant 1 : index
    %c0_53 = arith.constant 0 : index
    %c0_54 = arith.constant 0 : index
    %69 = vector.load %arg9[%c1_52, %c0_53, %c0_54] : memref<2x32x1xf32, #tpu.memory_space<vmem>>, vector<1x32x1xf32>
    %70 = vector.shape_cast %69 : vector<1x32x1xf32> to vector<32x1xf32>
    %71 = vector.broadcast %70 : vector<32x1xf32> to vector<32x64xf32>
    %72 = arith.mulf %68, %71 : vector<32x64xf32>
    %c1_55 = arith.constant 1 : index
    %c0_56 = arith.constant 0 : index
    %c0_57 = arith.constant 0 : index
    %73 = vector.load %arg10[%c1_55, %c0_56, %c0_57] : memref<2x32x1xf32, #tpu.memory_space<vmem>>, vector<1x32x1xf32>
    %74 = vector.shape_cast %73 : vector<1x32x1xf32> to vector<32x1xf32>
    %75 = vector.broadcast %74 : vector<32x1xf32> to vector<32x64xf32>
    %76 = arith.addf %72, %75 : vector<32x64xf32>
    %cst_58 = arith.constant 0.000000e+00 : f32
    %77 = vector.broadcast %cst_58 : f32 to vector<32x64xf32>
    %78 = arith.maximumf %76, %77 : vector<32x64xf32>
    %79 = arith.addf %46, %78 : vector<32x64xf32>
    %c2 = arith.constant 2 : index
    %c0_59 = arith.constant 0 : index
    %c0_60 = arith.constant 0 : index
    %80 = vector.load %arg11[%c2, %c0_59, %c0_60] : memref<3x64x32xf32, #tpu.memory_space<vmem>>, vector<1x64x32xf32>
    %81 = vector.shape_cast %80 : vector<1x64x32xf32> to vector<64x32xf32>
    %cst_61 = arith.constant dense<0.000000e+00> : vector<64x64xf32>
    %82 = tpu.matmul %81, %79, %cst_61 {dimension_numbers = #tpu.dot_dimension_numbers<[1], [0], [0], [1], [0, 0, 1, 1], [], []>} : vector<64x32xf32>, vector<32x64xf32>, vector<64x64xf32> -> vector<64x64xf32>
    %83 = vector.extract_strided_slice %82 {offsets = [0, 0], sizes = [32, 64], strides = [1, 1]} : vector<64x64xf32> to vector<32x64xf32>
    %84 = vector.extract_strided_slice %82 {offsets = [32, 0], sizes = [32, 64], strides = [1, 1]} : vector<64x64xf32> to vector<32x64xf32>
    %85 = tpu.concatenate %83, %84 in 1 : vector<32x64xf32>, vector<32x64xf32> -> vector<32x128xf32>
    %cst_62 = arith.constant dense<0.000000e+00> : vector<32x128xf32>
    %86 = tpu.matmul %85, %7, %cst_62 {dimension_numbers = #tpu.dot_dimension_numbers<[1], [0], [0], [1], [0, 0, 1, 1], [], []>} : vector<32x128xf32>, vector<128x128xf32>, vector<32x128xf32> -> vector<32x128xf32>
    %87 = vector.extract_strided_slice %13 {offsets = [64, 0], sizes = [32, 128], strides = [1, 1]} : vector<96x128xf32> to vector<32x128xf32>
    %88 = arith.addf %86, %87 : vector<32x128xf32>
    %cst_63 = arith.constant 0.000000e+00 : f32
    %89 = vector.broadcast %cst_63 : f32 to vector<32x128xf32>
    %90 = arith.maximumf %88, %89 : vector<32x128xf32>
    %91 = tpu.concatenate %24, %57, %90 in 0 : vector<32x128xf32>, vector<32x128xf32>, vector<32x128xf32> -> vector<96x128xf32>
    %c0_64 = arith.constant 0 : index
    %c0_65 = arith.constant 0 : index
    %92 = vector.load %arg14[%c0_64, %c0_65] : memref<1x96xf32, #tpu.memory_space<vmem>>, vector<1x96xf32>
    %cst_66 = arith.constant dense<0.000000e+00> : vector<1x128xf32>
    %93 = tpu.matmul %92, %91, %cst_66 {dimension_numbers = #tpu.dot_dimension_numbers<[1], [0], [0], [1], [0, 0, 1, 1], [], []>} : vector<1x96xf32>, vector<96x128xf32>, vector<1x128xf32> -> vector<1x128xf32>
    %c0_67 = arith.constant 0 : index
    %c0_68 = arith.constant 0 : index
    %94 = vector.load %arg15[%c0_67, %c0_68] : memref<1x1xf32, #tpu.memory_space<vmem>>, vector<1x1xf32>
    %95 = vector.broadcast %94 : vector<1x1xf32> to vector<1x128xf32>
    %96 = arith.addf %93, %95 : vector<1x128xf32>
    %cst_69 = arith.constant 0.000000e+00 : f32
    %97 = vector.broadcast %cst_69 : f32 to vector<1x128xf32>
    %98 = arith.maximumf %96, %97 : vector<1x128xf32>
    %c0_70 = arith.constant 0 : index
    %c0_71 = arith.constant 0 : index
    %99 = vector.load %arg16[%c0_70, %c0_71] : memref<1x128xf32, #tpu.memory_space<vmem>>, vector<1x128xf32>
    tpu.vector_store %arg16[%c0_70, %c0_71], %98 {strides = array<i32>} : memref<1x128xf32, #tpu.memory_space<vmem>>, vector<1x128xf32>,
    return
  }
  func.func @transform_0(%arg0: i32) -> (i32, i32) {
    %c0_i32 = arith.constant 0 : i32
    %c0_i32_0 = arith.constant 0 : i32
    %c0_i32_1 = arith.constant 0 : i32
    return %c0_i32, %c0_i32_0 : i32, i32
  }
  func.func @transform_1(%arg0: i32) -> (i32, i32) {
    %c0_i32 = arith.constant 0 : i32
    %c0_i32_0 = arith.constant 0 : i32
    %c0_i32_1 = arith.constant 0 : i32
    return %c0_i32, %c0_i32_0 : i32, i32
  }
  func.func @transform_2(%arg0: i32) -> (i32, i32) {
    %c0_i32 = arith.constant 0 : i32
    %c0_i32_0 = arith.constant 0 : i32
    return %c0_i32, %arg0 : i32, i32
  }
  func.func @transform_3(%arg0: i32) -> (i32, i32) {
    %c0_i32 = arith.constant 0 : i32
    %c0_i32_0 = arith.constant 0 : i32
    return %c0_i32, %arg0 : i32, i32
  }
  func.func @transform_4(%arg0: i32) -> (i32, i32) {
    %c0_i32 = arith.constant 0 : i32
    %c0_i32_0 = arith.constant 0 : i32
    %c0_i32_1 = arith.constant 0 : i32
    return %c0_i32, %c0_i32_0 : i32, i32
  }
  func.func @transform_5(%arg0: i32) -> (i32, i32) {
    %c0_i32 = arith.constant 0 : i32
    %c0_i32_0 = arith.constant 0 : i32
    %c0_i32_1 = arith.constant 0 : i32
    return %c0_i32, %c0_i32_0 : i32, i32
  }
  func.func @transform_6(%arg0: i32) -> (i32, i32, i32) {
    %c0_i32 = arith.constant 0 : i32
    %c0_i32_0 = arith.constant 0 : i32
    %c0_i32_1 = arith.constant 0 : i32
    %c0_i32_2 = arith.constant 0 : i32
    return %c0_i32, %c0_i32_0, %c0_i32_1 : i32, i32, i32
  }
  func.func @transform_7(%arg0: i32) -> (i32, i32, i32) {
    %c0_i32 = arith.constant 0 : i32
    %c0_i32_0 = arith.constant 0 : i32
    %c0_i32_1 = arith.constant 0 : i32
    %c0_i32_2 = arith.constant 0 : i32
    return %c0_i32, %c0_i32_0, %c0_i32_1 : i32, i32, i32
  }
  func.func @transform_8(%arg0: i32) -> (i32, i32, i32) {
    %c0_i32 = arith.constant 0 : i32
    %c0_i32_0 = arith.constant 0 : i32
    %c0_i32_1 = arith.constant 0 : i32
    %c0_i32_2 = arith.constant 0 : i32
    return %c0_i32, %c0_i32_0, %c0_i32_1 : i32, i32, i32
  }
  func.func @transform_9(%arg0: i32) -> (i32, i32, i32) {
    %c0_i32 = arith.constant 0 : i32
    %c0_i32_0 = arith.constant 0 : i32
    %c0_i32_1 = arith.constant 0 : i32
    %c0_i32_2 = arith.constant 0 : i32
    return %c0_i32, %c0_i32_0, %c0_i32_1 : i32, i32, i32
  }
  func.func @transform_10(%arg0: i32) -> (i32, i32, i32) {
    %c0_i32 = arith.constant 0 : i32
    %c0_i32_0 = arith.constant 0 : i32
    %c0_i32_1 = arith.constant 0 : i32
    %c0_i32_2 = arith.constant 0 : i32
    return %c0_i32, %c0_i32_0, %c0_i32_1 : i32, i32, i32
  }
  func.func @transform_11(%arg0: i32) -> (i32, i32) {
    %c0_i32 = arith.constant 0 : i32
    %c0_i32_0 = arith.constant 0 : i32
    %c0_i32_1 = arith.constant 0 : i32
    return %c0_i32, %c0_i32_0 : i32, i32
  }
  func.func @transform_12(%arg0: i32) -> (i32, i32) {
    %c0_i32 = arith.constant 0 : i32
    %c0_i32_0 = arith.constant 0 : i32
    %c0_i32_1 = arith.constant 0 : i32
    return %c0_i32, %c0_i32_0 : i32, i32
  }
  func.func @transform_13(%arg0: i32) -> (i32, i32) {
    %c0_i32 = arith.constant 0 : i32
    %c0_i32_0 = arith.constant 0 : i32
    %c0_i32_1 = arith.constant 0 : i32
    return %c0_i32, %c0_i32_0 : i32, i32
  }
  func.func @transform_14(%arg0: i32) -> (i32, i32) {
    %c0_i32 = arith.constant 0 : i32
    %c0_i32_0 = arith.constant 0 : i32
    %c0_i32_1 = arith.constant 0 : i32
    return %c0_i32, %c0_i32_0 : i32, i32
  }
  func.func @transform_15(%arg0: i32) -> (i32, i32) {
    %c0_i32 = arith.constant 0 : i32
    %c0_i32_0 = arith.constant 0 : i32
    return %c0_i32, %arg0 : i32, i32
  }
}

</mosaic_0001>

<llo_original>
// kernel: tpu_custom_call.1
$region0: #{tpu_custom_call.1}
  #allocation0 [shape = 'u32[]', space=smem, size = 0x4, offset = 0x4, fixed_abs, tag = 'smem constant byte address 0x4 - core index']
  #allocation1 [shape = 'u32[144,128]{1,0:T(1,128)}', space=vmem, size = 0x12000, scoped, tag = 'internal scratch']
  #allocation2 [shape = 'f32[1,1]{1,0:T(1,128)S(1)}', space=vmem, size = 0x200, scoped, tag = 'scoped memory for tpu_custom_call.1']
  %s0 = inlined_call_operand.hbm [shape: f32[4,64], index: 0, kind: input, shape index: {}]
  %s1 = inlined_call_operand.hbm [shape: f32[64,64], index: 1, kind: input, shape index: {}]
  %s2 = inlined_call_operand.hbm [shape: f32[128,256], index: 2, kind: input, shape index: {}]
  %s3 = inlined_call_operand.hbm [shape: f32[2,256], index: 3, kind: input, shape index: {}]
  %s4 = inlined_call_operand.hbm [shape: f32[32,4], index: 4, kind: input, shape index: {}]
  %s5 = inlined_call_operand.hbm [shape: f32[32,1], index: 5, kind: input, shape index: {}]
  %s6 = inlined_call_operand.hbm [shape: f32[2,32,32], index: 6, kind: input, shape index: {}]
  %s7 = inlined_call_operand.hbm [shape: f32[2,32,1], index: 7, kind: input, shape index: {}]
  %s8 = inlined_call_operand.hbm [shape: f32[2,32,1], index: 8, kind: input, shape index: {}]
  %s9 = inlined_call_operand.hbm [shape: f32[2,32,1], index: 9, kind: input, shape index: {}]
  %s10 = inlined_call_operand.hbm [shape: f32[3,64,32], index: 10, kind: input, shape index: {}]
  %s11 = inlined_call_operand.hbm [shape: f32[96,2], index: 11, kind: input, shape index: {}]
  %s12 = inlined_call_operand.hbm [shape: f32[96,1], index: 12, kind: input, shape index: {}]
  %s13 = inlined_call_operand.hbm [shape: f32[1,96], index: 13, kind: input, shape index: {}]
  %s14 = inlined_call_operand.<no memory space> [shape: f32[1,1], index: 14, kind: input, shape index: {}]
  %s15 = inlined_call_operand.hbm [shape: f32[1,256], index: 15, kind: output, shape index: {}]
  %s16 = sld [smem:[#allocation0]]
  $region149: #{tpu_custom_call.1} parent=0
    _
  %s18 = ssub.s32 1, %s16
  %s19 = scalar_select 0, %s18, %s16
  %v20 = vstv %s14
  %21 = vst [vmem:[#allocation2] sm:$0x1] %v20
  $region1: #{tpu_custom_call.1} parent=0
    #allocation3 [shape = 'u8[2048]{0}', space=vmem, size = 0x800, scoped, tag = 'input window, operand 0, single buffered']
    #allocation4 [shape = 's32[2]{0}', space=sflag, size = 0x8, scoped, tag = 'scoped memory for tpu_custom_call.1']
    #allocation5 [shape = 's32[2]{0}', space=sflag, size = 0x8, scoped, tag = 'scoped memory for tpu_custom_call.1']
    #allocation6 [shape = 'u8[32768]{0}', space=vmem, size = 0x8000, scoped, tag = 'input window, operand 1, single buffered']
    #allocation7 [shape = 's32[1]{0}', space=sflag, size = 0x4, scoped, tag = 'scoped memory for tpu_custom_call.1']
    #allocation8 [shape = 'u8[131072]{0}', space=vmem, size = 0x20000, scoped, tag = 'input window, operand 2']
    #allocation9 [shape = 'u8[2048]{0}', space=vmem, size = 0x800, scoped, tag = 'input window, operand 3']
    #allocation10 [shape = 'u8[16384]{0}', space=vmem, size = 0x4000, scoped, tag = 'input window, operand 4, single buffered']
    #allocation11 [shape = 'u8[16384]{0}', space=vmem, size = 0x4000, scoped, tag = 'input window, operand 5, single buffered']
    #allocation12 [shape = 's32[1]{0}', space=sflag, size = 0x4, scoped, tag = 'scoped memory for tpu_custom_call.1']
    #allocation13 [shape = 'u8[32768]{0}', space=vmem, size = 0x8000, scoped, tag = 'input window, operand 6, single buffered']
    #allocation14 [shape = 'u8[32768]{0}', space=vmem, size = 0x8000, scoped, tag = 'input window, operand 7, single buffered']
    #allocation15 [shape = 's32[1]{0}', space=sflag, size = 0x4, scoped, tag = 'scoped memory for tpu_custom_call.1']
    #allocation16 [shape = 'u8[32768]{0}', space=vmem, size = 0x8000, scoped, tag = 'input window, operand 8, single buffered']
    #allocation17 [shape = 'u8[32768]{0}', space=vmem, size = 0x8000, scoped, tag = 'input window, operand 9, single buffered']
    #allocation18 [shape = 's32[1]{0}', space=sflag, size = 0x4, scoped, tag = 'scoped memory for tpu_custom_call.1']
    #allocation19 [shape = 'u8[98304]{0}', space=vmem, size = 0x18000, scoped, tag = 'input window, operand 10, single buffered']
    #allocation20 [shape = 'u8[49152]{0}', space=vmem, size = 0xc000, scoped, tag = 'input window, operand 11, single buffered']
    #allocation21 [shape = 's32[1]{0}', space=sflag, size = 0x4, scoped, tag = 'scoped memory for tpu_custom_call.1']
    #allocation22 [shape = 'u8[49152]{0}', space=vmem, size = 0xc000, scoped, tag = 'input window, operand 12, single buffered']
    #allocation23 [shape = 'u8[512]{0}', space=vmem, size = 0x400, scoped, tag = 'input window, operand 13, single buffered']
    #allocation24 [shape = 's32[1]{0}', space=sflag, size = 0x4, scoped, tag = 'scoped memory for tpu_custom_call.1']
    #allocation25 [shape = 'u8[1024]{0}', space=vmem, size = 0x400, scoped, tag = 'output window, operand 0']
    %22 = vsyncpa [#allocation4], 0
    %23 = vsyncpa [#allocation7], 0
    %24 = vsyncpa [#allocation12], 0
    %25 = vsyncpa [#allocation15], 0
    %26 = vsyncpa [#allocation18], 0
    %27 = vsyncpa [#allocation21], 0
    %28 = vsyncpa [#allocation24], 0
    %29 = vsyncpa [#allocation5], 0
    %s30 = scalar_lea.sflag [#allocation5], 1
    %31 = vsyncpa %s30, 0
    loop: start=0, step=1, limit=4
    $region2: #{tpu_custom_call.1} parent=1 // loop_pre_header
      _
    $region3: #{tpu_custom_call.1} parent=1 // loop_header
      %s33 = sphi 0, %s37
      %p34 = scmp.ge.s32.totalorder %s33, 4
      %s41 = sphi 0, %s41
      %s43 = sphi 0, %s41
      %s44 = sphi 0, %s43
      %s58 = sphi 0, %s44
      %s62 = sphi 0, %s62
      %s64 = sphi 0, %s62
      %s65 = sphi 0, %s64
      %s79 = sphi 0, %s65
      %s85 = sphi 0, %s87
      %s88 = sphi 0, %s85
      %s89 = sphi 0, %s88
      %s105 = sphi 0, %s89
      %s111 = sphi 0, %s113
      %s114 = sphi 0, %s111
      %s115 = sphi 0, %s114
      %s131 = sphi 0, %s115
      %s135 = sphi 0, %s135
      %s137 = sphi 0, %s135
      %s138 = sphi 0, %s137
      %s152 = sphi 0, %s138
      %s156 = sphi 0, %s156
      %s158 = sphi 0, %s156
      %s159 = sphi 0, %s158
      %s173 = sphi 0, %s159
      %s177 = sphi 0, %s177
      %s179 = sphi 0, %s177
      %s180 = sphi 0, %s179
      %s194 = sphi 0, %s180
      %s198 = sphi 0, %s198
      %s200 = sphi 0, %s198
      %s201 = sphi 0, %s200
      %s215 = sphi 0, %s201
      %s219 = sphi 0, %s219
      %s221 = sphi 0, %s219
      %s222 = sphi 0, %s221
      %s236 = sphi 0, %s222
      %s240 = sphi 0, %s240
      %s242 = sphi 0, %s240
      %s243 = sphi 0, %s242
      %s257 = sphi 0, %s243
      %s261 = sphi 0, %s261
      %s263 = sphi 0, %s261
      %s264 = sphi 0, %s263
      %s278 = sphi 0, %s264
      %s282 = sphi 0, %s282
      %s284 = sphi 0, %s282
      %s285 = sphi 0, %s284
      %s299 = sphi 0, %s285
      %s303 = sphi 0, %s303
      %s305 = sphi 0, %s303
      %s306 = sphi 0, %s305
      %s320 = sphi 0, %s306
      %s324 = sphi 0, %s324
      %s326 = sphi 0, %s324
      %s327 = sphi 0, %s326
      %s341 = sphi 0, %s327
      %s345 = sphi 0, %s345
      %s347 = sphi 0, %s345
      %s348 = sphi 0, %s347
      %s362 = sphi 0, %s348
      %s368 = sphi 0, %s370
      %s371 = sphi 0, %s368
      %s372 = sphi 0, %s371
      %s388 = sphi 0, %s372
    $region4: #{tpu_custom_call.1} parent=1 // loop_header_branch
      %36 = sbr.rel (%p34) target = $region8
    $region5: #{tpu_custom_call.1} parent=1 // loop_body
      %s38 = ssub.s32 %s33, 1
      %s39 = ssub.s32 %s33, 2
      %s40 = sadd.s32 %s33, 1
      %s42 = sadd.s32 %s41, 1
      %p45 = scmp.eq.s32.totalorder %s33, 1
      %p46 = scmp.ne.s32.totalorder %s41, %s43
      %p47 = scmp.eq.s32.totalorder %s33, 0
      %p48 = por %p46, %p47
      %p49 = scmp.ne.s32.totalorder %s41, %s43
      %p50 = scmp.eq.s32.totalorder %s38, 1
      %p51 = por %p49, %p50
      %p52 = scmp.ne.s32.totalorder %s43, %s44
      %p53 = scmp.eq.s32.totalorder %s38, 0
      %p54 = por %p52, %p53
      %p55 = scmp.ne.s32.totalorder %s43, %s44
      %p56 = scmp.eq.s32.totalorder %s39, 1
      %p57 = por %p55, %p56
      %p59 = scmp.ne.s32.totalorder %s44, %s58
      %p60 = scmp.eq.s32.totalorder %s39, 0
      %p61 = por %p59, %p60
      %s63 = sadd.s32 %s62, 1
      %p66 = scmp.eq.s32.totalorder %s33, 1
      %p67 = scmp.ne.s32.totalorder %s62, %s64
      %p68 = scmp.eq.s32.totalorder %s33, 0
      %p69 = por %p67, %p68
      %p70 = scmp.ne.s32.totalorder %s62, %s64
      %p71 = scmp.eq.s32.totalorder %s38, 1
      %p72 = por %p70, %p71
      %p73 = scmp.ne.s32.totalorder %s64, %s65
      %p74 = scmp.eq.s32.totalorder %s38, 0
      %p75 = por %p73, %p74
      %p76 = scmp.ne.s32.totalorder %s64, %s65
      %p77 = scmp.eq.s32.totalorder %s39, 1
      %p78 = por %p76, %p77
      %p80 = scmp.ne.s32.totalorder %s65, %s79
      %p81 = scmp.eq.s32.totalorder %s39, 0
      %p82 = por %p80, %p81
      %s83 = ssub.s32 %s33, %s40
      %p84 = scmp.eq.s32.totalorder %s83, 0
      %s86 = sadd.s32 %s85, 1
      %s87 = scalar_select %p84, %s85, %s86
      %p90 = pneg %p84
      %p91 = scmp.eq.s32.totalorder %s33, 1
      %p92 = por %p90, %p91
      %p93 = scmp.ne.s32.totalorder %s85, %s88
      %p94 = scmp.eq.s32.totalorder %s33, 0
      %p95 = por %p93, %p94
      %p96 = scmp.ne.s32.totalorder %s85, %s88
      %p97 = scmp.eq.s32.totalorder %s38, 1
      %p98 = por %p96, %p97
      %p99 = scmp.ne.s32.totalorder %s88, %s89
      %p100 = scmp.eq.s32.totalorder %s38, 0
      %p101 = por %p99, %p100
      %p102 = scmp.ne.s32.totalorder %s88, %s89
      %p103 = scmp.eq.s32.totalorder %s39, 1
      %p104 = por %p102, %p103
      %p106 = scmp.ne.s32.totalorder %s89, %s105
      %p107 = scmp.eq.s32.totalorder %s39, 0
      %p108 = por %p106, %p107
      %s109 = ssub.s32 %s33, %s40
      %p110 = scmp.eq.s32.totalorder %s109, 0
      %s112 = sadd.s32 %s111, 1
      %s113 = scalar_select %p110, %s111, %s112
      %p116 = pneg %p110
      %p117 = scmp.eq.s32.totalorder %s33, 1
      %p118 = por %p116, %p117
      %p119 = scmp.ne.s32.totalorder %s111, %s114
      %p120 = scmp.eq.s32.totalorder %s33, 0
      %p121 = por %p119, %p120
      %p122 = scmp.ne.s32.totalorder %s111, %s114
      %p123 = scmp.eq.s32.totalorder %s38, 1
      %p124 = por %p122, %p123
      %p125 = scmp.ne.s32.totalorder %s114, %s115
      %p126 = scmp.eq.s32.totalorder %s38, 0
      %p127 = por %p125, %p126
      %p128 = scmp.ne.s32.totalorder %s114, %s115
      %p129 = scmp.eq.s32.totalorder %s39, 1
      %p130 = por %p128, %p129
      %p132 = scmp.ne.s32.totalorder %s115, %s131
      %p133 = scmp.eq.s32.totalorder %s39, 0
      %p134 = por %p132, %p133
      %s136 = sadd.s32 %s135, 1
      %p139 = scmp.eq.s32.totalorder %s33, 1
      %p140 = scmp.ne.s32.totalorder %s135, %s137
      %p141 = scmp.eq.s32.totalorder %s33, 0
      %p142 = por %p140, %p141
      %p143 = scmp.ne.s32.totalorder %s135, %s137
      %p144 = scmp.eq.s32.totalorder %s38, 1
      %p145 = por %p143, %p144
      %p146 = scmp.ne.s32.totalorder %s137, %s138
      %p147 = scmp.eq.s32.totalorder %s38, 0
      %p148 = por %p146, %p147
      %p149 = scmp.ne.s32.totalorder %s137, %s138
      %p150 = scmp.eq.s32.totalorder %s39, 1
      %p151 = por %p149, %p150
      %p153 = scmp.ne.s32.totalorder %s138, %s152
      %p154 = scmp.eq.s32.totalorder %s39, 0
      %p155 = por %p153, %p154
      %s157 = sadd.s32 %s156, 1
      %p160 = scmp.eq.s32.totalorder %s33, 1
      %p161 = scmp.ne.s32.totalorder %s156, %s158
      %p162 = scmp.eq.s32.totalorder %s33, 0
      %p163 = por %p161, %p162
      %p164 = scmp.ne.s32.totalorder %s156, %s158
      %p165 = scmp.eq.s32.totalorder %s38, 1
      %p166 = por %p164, %p165
      %p167 = scmp.ne.s32.totalorder %s158, %s159
      %p168 = scmp.eq.s32.totalorder %s38, 0
      %p169 = por %p167, %p168
      %p170 = scmp.ne.s32.totalorder %s158, %s159
      %p171 = scmp.eq.s32.totalorder %s39, 1
      %p172 = por %p170, %p171
      %p174 = scmp.ne.s32.totalorder %s159, %s173
      %p175 = scmp.eq.s32.totalorder %s39, 0
      %p176 = por %p174, %p175
      %s178 = sadd.s32 %s177, 1
      %p181 = scmp.eq.s32.totalorder %s33, 1
      %p182 = scmp.ne.s32.totalorder %s177, %s179
      %p183 = scmp.eq.s32.totalorder %s33, 0
      %p184 = por %p182, %p183
      %p185 = scmp.ne.s32.totalorder %s177, %s179
      %p186 = scmp.eq.s32.totalorder %s38, 1
      %p187 = por %p185, %p186
      %p188 = scmp.ne.s32.totalorder %s179, %s180
      %p189 = scmp.eq.s32.totalorder %s38, 0
      %p190 = por %p188, %p189
      %p191 = scmp.ne.s32.totalorder %s179, %s180
      %p192 = scmp.eq.s32.totalorder %s39, 1
      %p193 = por %p191, %p192
      %p195 = scmp.ne.s32.totalorder %s180, %s194
      %p196 = scmp.eq.s32.totalorder %s39, 0
      %p197 = por %p195, %p196
      %s199 = sadd.s32 %s198, 1
      %p202 = scmp.eq.s32.totalorder %s33, 1
      %p203 = scmp.ne.s32.totalorder %s198, %s200
      %p204 = scmp.eq.s32.totalorder %s33, 0
      %p205 = por %p203, %p204
      %p206 = scmp.ne.s32.totalorder %s198, %s200
      %p207 = scmp.eq.s32.totalorder %s38, 1
      %p208 = por %p206, %p207
      %p209 = scmp.ne.s32.totalorder %s200, %s201
      %p210 = scmp.eq.s32.totalorder %s38, 0
      %p211 = por %p209, %p210
      %p212 = scmp.ne.s32.totalorder %s200, %s201
      %p213 = scmp.eq.s32.totalorder %s39, 1
      %p214 = por %p212, %p213
      %p216 = scmp.ne.s32.totalorder %s201, %s215
      %p217 = scmp.eq.s32.totalorder %s39, 0
      %p218 = por %p216, %p217
      %s220 = sadd.s32 %s219, 1
      %p223 = scmp.eq.s32.totalorder %s33, 1
      %p224 = scmp.ne.s32.totalorder %s219, %s221
      %p225 = scmp.eq.s32.totalorder %s33, 0
      %p226 = por %p224, %p225
      %p227 = scmp.ne.s32.totalorder %s219, %s221
      %p228 = scmp.eq.s32.totalorder %s38, 1
      %p229 = por %p227, %p228
      %p230 = scmp.ne.s32.totalorder %s221, %s222
      %p231 = scmp.eq.s32.totalorder %s38, 0
      %p232 = por %p230, %p231
      %p233 = scmp.ne.s32.totalorder %s221, %s222
      %p234 = scmp.eq.s32.totalorder %s39, 1
      %p235 = por %p233, %p234
      %p237 = scmp.ne.s32.totalorder %s222, %s236
      %p238 = scmp.eq.s32.totalorder %s39, 0
      %p239 = por %p237, %p238
      %s241 = sadd.s32 %s240, 1
      %p244 = scmp.eq.s32.totalorder %s33, 1
      %p245 = scmp.ne.s32.totalorder %s240, %s242
      %p246 = scmp.eq.s32.totalorder %s33, 0
      %p247 = por %p245, %p246
      %p248 = scmp.ne.s32.totalorder %s240, %s242
      %p249 = scmp.eq.s32.totalorder %s38, 1
      %p250 = por %p248, %p249
      %p251 = scmp.ne.s32.totalorder %s242, %s243
      %p252 = scmp.eq.s32.totalorder %s38, 0
      %p253 = por %p251, %p252
      %p254 = scmp.ne.s32.totalorder %s242, %s243
      %p255 = scmp.eq.s32.totalorder %s39, 1
      %p256 = por %p254, %p255
      %p258 = scmp.ne.s32.totalorder %s243, %s257
      %p259 = scmp.eq.s32.totalorder %s39, 0
      %p260 = por %p258, %p259
      %s262 = sadd.s32 %s261, 1
      %p265 = scmp.eq.s32.totalorder %s33, 1
      %p266 = scmp.ne.s32.totalorder %s261, %s263
      %p267 = scmp.eq.s32.totalorder %s33, 0
      %p268 = por %p266, %p267
      %p269 = scmp.ne.s32.totalorder %s261, %s263
      %p270 = scmp.eq.s32.totalorder %s38, 1
      %p271 = por %p269, %p270
      %p272 = scmp.ne.s32.totalorder %s263, %s264
      %p273 = scmp.eq.s32.totalorder %s38, 0
      %p274 = por %p272, %p273
      %p275 = scmp.ne.s32.totalorder %s263, %s264
      %p276 = scmp.eq.s32.totalorder %s39, 1
      %p277 = por %p275, %p276
      %p279 = scmp.ne.s32.totalorder %s264, %s278
      %p280 = scmp.eq.s32.totalorder %s39, 0
      %p281 = por %p279, %p280
      %s283 = sadd.s32 %s282, 1
      %p286 = scmp.eq.s32.totalorder %s33, 1
      %p287 = scmp.ne.s32.totalorder %s282, %s284
      %p288 = scmp.eq.s32.totalorder %s33, 0
      %p289 = por %p287, %p288
      %p290 = scmp.ne.s32.totalorder %s282, %s284
      %p291 = scmp.eq.s32.totalorder %s38, 1
      %p292 = por %p290, %p291
      %p293 = scmp.ne.s32.totalorder %s284, %s285
      %p294 = scmp.eq.s32.totalorder %s38, 0
      %p295 = por %p293, %p294
      %p296 = scmp.ne.s32.totalorder %s284, %s285
      %p297 = scmp.eq.s32.totalorder %s39, 1
      %p298 = por %p296, %p297
      %p300 = scmp.ne.s32.totalorder %s285, %s299
      %p301 = scmp.eq.s32.totalorder %s39, 0
      %p302 = por %p300, %p301
      %s304 = sadd.s32 %s303, 1
      %p307 = scmp.eq.s32.totalorder %s33, 1
      %p308 = scmp.ne.s32.totalorder %s303, %s305
      %p309 = scmp.eq.s32.totalorder %s33, 0
      %p310 = por %p308, %p309
      %p311 = scmp.ne.s32.totalorder %s303, %s305
      %p312 = scmp.eq.s32.totalorder %s38, 1
      %p313 = por %p311, %p312
      %p314 = scmp.ne.s32.totalorder %s305, %s306
      %p315 = scmp.eq.s32.totalorder %s38, 0
      %p316 = por %p314, %p315
      %p317 = scmp.ne.s32.totalorder %s305, %s306
      %p318 = scmp.eq.s32.totalorder %s39, 1
      %p319 = por %p317, %p318
      %p321 = scmp.ne.s32.totalorder %s306, %s320
      %p322 = scmp.eq.s32.totalorder %s39, 0
      %p323 = por %p321, %p322
      %s325 = sadd.s32 %s324, 1
      %p328 = scmp.eq.s32.totalorder %s33, 1
      %p329 = scmp.ne.s32.totalorder %s324, %s326
      %p330 = scmp.eq.s32.totalorder %s33, 0
      %p331 = por %p329, %p330
      %p332 = scmp.ne.s32.totalorder %s324, %s326
      %p333 = scmp.eq.s32.totalorder %s38, 1
      %p334 = por %p332, %p333
      %p335 = scmp.ne.s32.totalorder %s326, %s327
      %p336 = scmp.eq.s32.totalorder %s38, 0
      %p337 = por %p335, %p336
      %p338 = scmp.ne.s32.totalorder %s326, %s327
      %p339 = scmp.eq.s32.totalorder %s39, 1
      %p340 = por %p338, %p339
      %p342 = scmp.ne.s32.totalorder %s327, %s341
      %p343 = scmp.eq.s32.totalorder %s39, 0
      %p344 = por %p342, %p343
      %s346 = sadd.s32 %s345, 1
      %p349 = scmp.eq.s32.totalorder %s33, 1
      %p350 = scmp.ne.s32.totalorder %s345, %s347
      %p351 = scmp.eq.s32.totalorder %s33, 0
      %p352 = por %p350, %p351
      %p353 = scmp.ne.s32.totalorder %s345, %s347
      %p354 = scmp.eq.s32.totalorder %s38, 1
      %p355 = por %p353, %p354
      %p356 = scmp.ne.s32.totalorder %s347, %s348
      %p357 = scmp.eq.s32.totalorder %s38, 0
      %p358 = por %p356, %p357
      %p359 = scmp.ne.s32.totalorder %s347, %s348
      %p360 = scmp.eq.s32.totalorder %s39, 1
      %p361 = por %p359, %p360
      %p363 = scmp.ne.s32.totalorder %s348, %s362
      %p364 = scmp.eq.s32.totalorder %s39, 0
      %p365 = por %p363, %p364
      %s366 = ssub.s32 %s33, %s40
      %p367 = scmp.eq.s32.totalorder %s366, 0
      %s369 = sadd.s32 %s368, 1
      %s370 = scalar_select %p367, %s368, %s369
      %p373 = pneg %p367
      %p374 = scmp.eq.s32.totalorder %s33, 1
      %p375 = por %p373, %p374
      %p376 = scmp.ne.s32.totalorder %s368, %s371
      %p377 = scmp.eq.s32.totalorder %s33, 0
      %p378 = por %p376, %p377
      %p379 = scmp.ne.s32.totalorder %s368, %s371
      %p380 = scmp.eq.s32.totalorder %s38, 1
      %p381 = por %p379, %p380
      %p382 = scmp.ne.s32.totalorder %s371, %s372
      %p383 = scmp.eq.s32.totalorder %s38, 0
      %p384 = por %p382, %p383
      %p385 = scmp.ne.s32.totalorder %s371, %s372
      %p386 = scmp.eq.s32.totalorder %s39, 1
      %p387 = por %p385, %p386
      %p389 = scmp.ne.s32.totalorder %s372, %s388
      %p390 = scmp.eq.s32.totalorder %s39, 0
      %p391 = por %p389, %p390
      %p392 = scmp.le.s32.totalorder 1, %s33
      %p393 = scmp.lt.s32.totalorder %s33, 3
      %p394 = pnand %p392, %p393
      %p395 = pneg %p394
      // Predicated region
      $region9: #{tpu_custom_call.1} parent=5 // pred_check
        _
      $region10: #{tpu_custom_call.1} parent=5 // pred_check_branch
        %397 = sbr.rel (%p394) target = $region12
      $region11: #{tpu_custom_call.1} parent=5 // pred_region
        %s398 = ssub.s32 %s33, 1
        // Predicated region
        $region13: #{tpu_custom_call.1} parent=11 // pred_check
          %p399 = pneg %p54
        $region14: #{tpu_custom_call.1} parent=11 // pred_check_branch
          %401 = sbr.rel (%p399) target = $region16
        $region15: #{tpu_custom_call.1} parent=11 // pred_region
          %s403 = ssub.s32 64, 64
          %404 = vsyncadd [#allocation4], %s403
          %s406 = sshll.u32 [#allocation3], 4
          %s407 = int_to_ptr.vmem [resolvable:$true] %s406
          %409 = dma.hbm_to_vmem [thread:$0]  %s0, 64, %s407, [#allocation4]
        $region16: #{tpu_custom_call.1} parent=11 // pred_fallthru
          _
        // Predicated region
        $region17: #{tpu_custom_call.1} parent=11 // pred_check
          %p410 = pneg %p75
        $region18: #{tpu_custom_call.1} parent=11 // pred_check_branch
          %412 = sbr.rel (%p410) target = $region20
        $region19: #{tpu_custom_call.1} parent=11 // pred_region
          %s414 = ssub.s32 1024, 1024
          %415 = vsyncadd [#allocation7], %s414
          %s416 = sshll.u32 [#allocation6], 4
          %s417 = int_to_ptr.vmem [resolvable:$true] %s416
          %422 = dma.hbm_to_vmem [thread:$0]  %s1, 1024, %s417, [#allocation7], 128, 128, 8
        $region20: #{tpu_custom_call.1} parent=11 // pred_fallthru
          _
        // Predicated region
        $region21: #{tpu_custom_call.1} parent=11 // pred_check
          %p423 = pneg %p148
        $region22: #{tpu_custom_call.1} parent=11 // pred_check_branch
          %425 = sbr.rel (%p423) target = $region24
        $region23: #{tpu_custom_call.1} parent=11 // pred_region
          %s427 = ssub.s32 512, 512
          %428 = vsyncadd [#allocation7], %s427
          %s429 = sshll.u32 [#allocation10], 4
          %s430 = int_to_ptr.vmem [resolvable:$true] %s429
          %435 = dma.hbm_to_vmem [thread:$0]  %s4, 512, %s430, [#allocation7], 128, 128, 8
        $region24: #{tpu_custom_call.1} parent=11 // pred_fallthru
          _
        // Predicated region
        $region25: #{tpu_custom_call.1} parent=11 // pred_check
          %p436 = pneg %p169
        $region26: #{tpu_custom_call.1} parent=11 // pred_check_branch
          %438 = sbr.rel (%p436) target = $region28
        $region27: #{tpu_custom_call.1} parent=11 // pred_region
          %s440 = ssub.s32 512, 512
          %441 = vsyncadd [#allocation12], %s440
          %s442 = sshll.u32 [#allocation11], 4
          %s443 = int_to_ptr.vmem [resolvable:$true] %s442
          %448 = dma.hbm_to_vmem [thread:$0]  %s5, 512, %s443, [#allocation12], 128, 128, 8
        $region28: #{tpu_custom_call.1} parent=11 // pred_fallthru
          _
        // Predicated region
        $region29: #{tpu_custom_call.1} parent=11 // pred_check
          %p449 = pneg %p190
        $region30: #{tpu_custom_call.1} parent=11 // pred_check_branch
          %451 = sbr.rel (%p449) target = $region32
        $region31: #{tpu_custom_call.1} parent=11 // pred_region
          %s453 = ssub.s32 1024, 1024
          %454 = vsyncadd [#allocation12], %s453
          %s455 = sshll.u32 [#allocation13], 4
          %s456 = int_to_ptr.vmem [resolvable:$true] %s455
          %461 = dma.hbm_to_vmem [thread:$0]  %s6, 1024, %s456, [#allocation12], 128, 128, 8
        $region32: #{tpu_custom_call.1} parent=11 // pred_fallthru
          _
        // Predicated region
        $region33: #{tpu_custom_call.1} parent=11 // pred_check
          %p462 = pneg %p211
        $region34: #{tpu_custom_call.1} parent=11 // pred_check_branch
          %464 = sbr.rel (%p462) target = $region36
        $region35: #{tpu_custom_call.1} parent=11 // pred_region
          %s466 = ssub.s32 1024, 1024
          %467 = vsyncadd [#allocation15], %s466
          %s468 = sshll.u32 [#allocation14], 4
          %s469 = int_to_ptr.vmem [resolvable:$true] %s468
          %474 = dma.hbm_to_vmem [thread:$0]  %s7, 1024, %s469, [#allocation15], 128, 128, 8
        $region36: #{tpu_custom_call.1} parent=11 // pred_fallthru
          _
        // Predicated region
        $region37: #{tpu_custom_call.1} parent=11 // pred_check
          %p475 = pneg %p232
        $region38: #{tpu_custom_call.1} parent=11 // pred_check_branch
          %477 = sbr.rel (%p475) target = $region40
        $region39: #{tpu_custom_call.1} parent=11 // pred_region
          %s479 = ssub.s32 1024, 1024
          %480 = vsyncadd [#allocation15], %s479
          %s481 = sshll.u32 [#allocation16], 4
          %s482 = int_to_ptr.vmem [resolvable:$true] %s481
          %487 = dma.hbm_to_vmem [thread:$0]  %s8, 1024, %s482, [#allocation15], 128, 128, 8
        $region40: #{tpu_custom_call.1} parent=11 // pred_fallthru
          _
        // Predicated region
        $region41: #{tpu_custom_call.1} parent=11 // pred_check
          %p488 = pneg %p253
        $region42: #{tpu_custom_call.1} parent=11 // pred_check_branch
          %490 = sbr.rel (%p488) target = $region44
        $region43: #{tpu_custom_call.1} parent=11 // pred_region
          %s492 = ssub.s32 1024, 1024
          %493 = vsyncadd [#allocation18], %s492
          %s494 = sshll.u32 [#allocation17], 4
          %s495 = int_to_ptr.vmem [resolvable:$true] %s494
          %500 = dma.hbm_to_vmem [thread:$0]  %s9, 1024, %s495, [#allocation18], 128, 128, 8
        $region44: #{tpu_custom_call.1} parent=11 // pred_fallthru
          _
        // Predicated region
        $region45: #{tpu_custom_call.1} parent=11 // pred_check
          %p501 = pneg %p274
        $region46: #{tpu_custom_call.1} parent=11 // pred_check_branch
          %503 = sbr.rel (%p501) target = $region48
        $region47: #{tpu_custom_call.1} parent=11 // pred_region
          %s505 = ssub.s32 3072, 3072
          %506 = vsyncadd [#allocation18], %s505
          %s507 = sshll.u32 [#allocation19], 4
          %s508 = int_to_ptr.vmem [resolvable:$true] %s507
          %513 = dma.hbm_to_vmem [thread:$0]  %s10, 3072, %s508, [#allocation18], 128, 128, 8
        $region48: #{tpu_custom_call.1} parent=11 // pred_fallthru
          _
        // Predicated region
        $region49: #{tpu_custom_call.1} parent=11 // pred_check
          %p514 = pneg %p295
        $region50: #{tpu_custom_call.1} parent=11 // pred_check_branch
          %516 = sbr.rel (%p514) target = $region52
        $region51: #{tpu_custom_call.1} parent=11 // pred_region
          %s518 = ssub.s32 1536, 1536
          %519 = vsyncadd [#allocation21], %s518
          %s520 = sshll.u32 [#allocation20], 4
          %s521 = int_to_ptr.vmem [resolvable:$true] %s520
          %526 = dma.hbm_to_vmem [thread:$0]  %s11, 1536, %s521, [#allocation21], 128, 128, 8
        $region52: #{tpu_custom_call.1} parent=11 // pred_fallthru
          _
        // Predicated region
        $region53: #{tpu_custom_call.1} parent=11 // pred_check
          %p527 = pneg %p316
        $region54: #{tpu_custom_call.1} parent=11 // pred_check_branch
          %529 = sbr.rel (%p527) target = $region56
        $region55: #{tpu_custom_call.1} parent=11 // pred_region
          %s531 = ssub.s32 1536, 1536
          %532 = vsyncadd [#allocation21], %s531
          %s533 = sshll.u32 [#allocation22], 4
          %s534 = int_to_ptr.vmem [resolvable:$true] %s533
          %539 = dma.hbm_to_vmem [thread:$0]  %s12, 1536, %s534, [#allocation21], 128, 128, 8
        $region56: #{tpu_custom_call.1} parent=11 // pred_fallthru
          _
        // Predicated region
        $region57: #{tpu_custom_call.1} parent=11 // pred_check
          %p540 = pneg %p337
        $region58: #{tpu_custom_call.1} parent=11 // pred_check_branch
          %542 = sbr.rel (%p540) target = $region60
        $region59: #{tpu_custom_call.1} parent=11 // pred_region
          %s544 = ssub.s32 16, 16
          %545 = vsyncadd [#allocation24], %s544
          %s547 = sshll.u32 [#allocation23], 4
          %s548 = int_to_ptr.vmem [resolvable:$true] %s547
          %550 = dma.hbm_to_vmem [thread:$0]  %s13, 16, %s548, [#allocation24]
        $region60: #{tpu_custom_call.1} parent=11 // pred_fallthru
          _
        // Predicated region
        $region61: #{tpu_custom_call.1} parent=11 // pred_check
          %p551 = pneg %p358
        $region62: #{tpu_custom_call.1} parent=11 // pred_check_branch
          %553 = sbr.rel (%p551) target = $region64
        $region63: #{tpu_custom_call.1} parent=11 // pred_region
          _
        $region64: #{tpu_custom_call.1} parent=11 // pred_fallthru
          _
      $region12: #{tpu_custom_call.1} parent=5 // pred_fallthru
        _
      %p554 = scmp.lt.s32.totalorder %s33, 2
      // Predicated region
      $region65: #{tpu_custom_call.1} parent=5 // pred_check
        %p555 = pneg %p554
      $region66: #{tpu_custom_call.1} parent=5 // pred_check_branch
        %557 = sbr.rel (%p555) target = $region68
      $region67: #{tpu_custom_call.1} parent=5 // pred_region
        // Predicated region
        $region69: #{tpu_custom_call.1} parent=67 // pred_check
          %p558 = pneg %p95
        $region70: #{tpu_custom_call.1} parent=67 // pred_check_branch
          %560 = sbr.rel (%p558) target = $region72
        $region71: #{tpu_custom_call.1} parent=67 // pred_region
          %s561 = sand.u32 %s33, 1
          %s562 = scalar_lea.sflag [#allocation4], %s561
          %s563 = sand.u32 %s85, 1
          %s564 = smul.addr %s563, 128
          %s565 = scalar_lea.vmem [#allocation8], %s564
          %s567 = ssub.s32 2048, 2048
          %568 = vsyncadd %s562, %s567
          %s569 = smul.addr %s33, 128
          %s570 = scalar_lea.hbm %s2, %s569
          %s571 = sshll.u32 %s565, 4
          %s572 = int_to_ptr.vmem [resolvable:$true] %s571
          %577 = dma.hbm_to_vmem [thread:$0]  %s570, 2048, %s572, %s562, 256, 128, 8
        $region72: #{tpu_custom_call.1} parent=67 // pred_fallthru
          _
        // Predicated region
        $region73: #{tpu_custom_call.1} parent=67 // pred_check
          %p578 = pneg %p121
        $region74: #{tpu_custom_call.1} parent=67 // pred_check_branch
          %580 = sbr.rel (%p578) target = $region76
        $region75: #{tpu_custom_call.1} parent=67 // pred_region
          %s581 = sand.u32 %s33, 1
          %s582 = scalar_lea.sflag [#allocation4], %s581
          %s583 = sand.u32 %s111, 1
          %s584 = smul.addr %s583, 2
          %s585 = scalar_lea.vmem [#allocation9], %s584
          %s587 = ssub.s32 32, 32
          %588 = vsyncadd %s582, %s587
          %s589 = smul.addr %s33, 32
          %s590 = scalar_lea.hbm %s3, %s589
          %s592 = sshll.u32 %s585, 4
          %s593 = int_to_ptr.vmem [resolvable:$true] %s592
          %595 = dma.hbm_to_vmem [thread:$0]  %s590, 32, %s593, %s582
        $region76: #{tpu_custom_call.1} parent=67 // pred_fallthru
          _
      $region68: #{tpu_custom_call.1} parent=5 // pred_fallthru
        _
      %p596 = scmp.le.s32.totalorder 1, %s33
      %p597 = scmp.lt.s32.totalorder %s33, 3
      %p598 = pnand %p596, %p597
      %p599 = pneg %p598
      // Predicated region
      $region77: #{tpu_custom_call.1} parent=5 // pred_check
        _
      $region78: #{tpu_custom_call.1} parent=5 // pred_check_branch
        %601 = sbr.rel (%p598) target = $region80
      $region79: #{tpu_custom_call.1} parent=5 // pred_region
        %s602 = ssub.s32 %s33, 1
        // Predicated region
        $region81: #{tpu_custom_call.1} parent=79 // pred_check
          %p603 = pneg %p54
        $region82: #{tpu_custom_call.1} parent=79 // pred_check_branch
          %605 = sbr.rel (%p603) target = $region84
        $region83: #{tpu_custom_call.1} parent=79 // pred_region
          %606 = dma.done [#allocation4], 64
        $region84: #{tpu_custom_call.1} parent=79 // pred_fallthru
          _
        // Predicated region
        $region85: #{tpu_custom_call.1} parent=79 // pred_check
          %p607 = pneg %p75
        $region86: #{tpu_custom_call.1} parent=79 // pred_check_branch
          %609 = sbr.rel (%p607) target = $region88
        $region87: #{tpu_custom_call.1} parent=79 // pred_region
          %610 = dma.done [#allocation7], 1024
        $region88: #{tpu_custom_call.1} parent=79 // pred_fallthru
          _
        %s611 = sand.u32 %s38, 1
        %s612 = scalar_lea.sflag [#allocation4], %s611
        %s613 = sand.u32 %s88, 1
        %s614 = smul.addr %s613, 128
        %s615 = scalar_lea.vmem [#allocation8], %s614
        // Predicated region
        $region89: #{tpu_custom_call.1} parent=79 // pred_check
          %p616 = pneg %p101
        $region90: #{tpu_custom_call.1} parent=79 // pred_check_branch
          %618 = sbr.rel (%p616) target = $region92
        $region91: #{tpu_custom_call.1} parent=79 // pred_region
          %619 = dma.done %s612, 2048
        $region92: #{tpu_custom_call.1} parent=79 // pred_fallthru
          _
        %s620 = sand.u32 %s38, 1
        %s621 = scalar_lea.sflag [#allocation4], %s620
        %s622 = sand.u32 %s114, 1
        %s623 = smul.addr %s622, 2
        %s624 = scalar_lea.vmem [#allocation9], %s623
        // Predicated region
        $region93: #{tpu_custom_call.1} parent=79 // pred_check
          %p625 = pneg %p127
        $region94: #{tpu_custom_call.1} parent=79 // pred_check_branch
          %627 = sbr.rel (%p625) target = $region96
        $region95: #{tpu_custom_call.1} parent=79 // pred_region
          %628 = dma.done %s621, 32
        $region96: #{tpu_custom_call.1} parent=79 // pred_fallthru
          _
        // Predicated region
        $region97: #{tpu_custom_call.1} parent=79 // pred_check
          %p629 = pneg %p148
        $region98: #{tpu_custom_call.1} parent=79 // pred_check_branch
          %631 = sbr.rel (%p629) target = $region100
        $region99: #{tpu_custom_call.1} parent=79 // pred_region
          %632 = dma.done [#allocation7], 512
        $region100: #{tpu_custom_call.1} parent=79 // pred_fallthru
          _
        // Predicated region
        $region101: #{tpu_custom_call.1} parent=79 // pred_check
          %p633 = pneg %p169
        $region102: #{tpu_custom_call.1} parent=79 // pred_check_branch
          %635 = sbr.rel (%p633) target = $region104
        $region103: #{tpu_custom_call.1} parent=79 // pred_region
          %636 = dma.done [#allocation12], 512
        $region104: #{tpu_custom_call.1} parent=79 // pred_fallthru
          _
        // Predicated region
        $region105: #{tpu_custom_call.1} parent=79 // pred_check
          %p637 = pneg %p190
        $region106: #{tpu_custom_call.1} parent=79 // pred_check_branch
          %639 = sbr.rel (%p637) target = $region108
        $region107: #{tpu_custom_call.1} parent=79 // pred_region
          %640 = dma.done [#allocation12], 1024
        $region108: #{tpu_custom_call.1} parent=79 // pred_fallthru
          _
        // Predicated region
        $region109: #{tpu_custom_call.1} parent=79 // pred_check
          %p641 = pneg %p211
        $region110: #{tpu_custom_call.1} parent=79 // pred_check_branch
          %643 = sbr.rel (%p641) target = $region112
        $region111: #{tpu_custom_call.1} parent=79 // pred_region
          %644 = dma.done [#allocation15], 1024
        $region112: #{tpu_custom_call.1} parent=79 // pred_fallthru
          _
        // Predicated region
        $region113: #{tpu_custom_call.1} parent=79 // pred_check
          %p645 = pneg %p232
        $region114: #{tpu_custom_call.1} parent=79 // pred_check_branch
          %647 = sbr.rel (%p645) target = $region116
        $region115: #{tpu_custom_call.1} parent=79 // pred_region
          %648 = dma.done [#allocation15], 1024
        $region116: #{tpu_custom_call.1} parent=79 // pred_fallthru
          _
        // Predicated region
        $region117: #{tpu_custom_call.1} parent=79 // pred_check
          %p649 = pneg %p253
        $region118: #{tpu_custom_call.1} parent=79 // pred_check_branch
          %651 = sbr.rel (%p649) target = $region120
        $region119: #{tpu_custom_call.1} parent=79 // pred_region
          %652 = dma.done [#allocation18], 1024
        $region120: #{tpu_custom_call.1} parent=79 // pred_fallthru
          _
        // Predicated region
        $region121: #{tpu_custom_call.1} parent=79 // pred_check
          %p653 = pneg %p274
        $region122: #{tpu_custom_call.1} parent=79 // pred_check_branch
          %655 = sbr.rel (%p653) target = $region124
        $region123: #{tpu_custom_call.1} parent=79 // pred_region
          %656 = dma.done [#allocation18], 3072
        $region124: #{tpu_custom_call.1} parent=79 // pred_fallthru
          _
        // Predicated region
        $region125: #{tpu_custom_call.1} parent=79 // pred_check
          %p657 = pneg %p295
        $region126: #{tpu_custom_call.1} parent=79 // pred_check_branch
          %659 = sbr.rel (%p657) target = $region128
        $region127: #{tpu_custom_call.1} parent=79 // pred_region
          %660 = dma.done [#allocation21], 1536
        $region128: #{tpu_custom_call.1} parent=79 // pred_fallthru
          _
        // Predicated region
        $region129: #{tpu_custom_call.1} parent=79 // pred_check
          %p661 = pneg %p316
        $region130: #{tpu_custom_call.1} parent=79 // pred_check_branch
          %663 = sbr.rel (%p661) target = $region132
        $region131: #{tpu_custom_call.1} parent=79 // pred_region
          %664 = dma.done [#allocation21], 1536
        $region132: #{tpu_custom_call.1} parent=79 // pred_fallthru
          _
        // Predicated region
        $region133: #{tpu_custom_call.1} parent=79 // pred_check
          %p665 = pneg %p337
        $region134: #{tpu_custom_call.1} parent=79 // pred_check_branch
          %667 = sbr.rel (%p665) target = $region136
        $region135: #{tpu_custom_call.1} parent=79 // pred_region
          %668 = dma.done [#allocation24], 16
        $region136: #{tpu_custom_call.1} parent=79 // pred_fallthru
          _
        %p669 = pneg %p54
        %p670 = pneg %p51
        %p671 = pneg %p75
        %p672 = pneg %p72
        %s673 = sand.u32 %s38, 1
        %s674 = scalar_lea.sflag [#allocation4], %s673
        %s675 = sand.u32 %s88, 1
        %s676 = smul.addr %s675, 128
        %s677 = scalar_lea.vmem [#allocation8], %s676
        %p678 = pneg %p101
        %p679 = pneg %p98
        %s680 = sand.u32 %s38, 1
        %s681 = scalar_lea.sflag [#allocation4], %s680
        %s682 = sand.u32 %s114, 1
        %s683 = smul.addr %s682, 2
        %s684 = scalar_lea.vmem [#allocation9], %s683
        %p685 = pneg %p127
        %p686 = pneg %p124
        %p687 = pneg %p148
        %p688 = pneg %p145
        %p689 = pneg %p169
        %p690 = pneg %p166
        %p691 = pneg %p190
        %p692 = pneg %p187
        %p693 = pneg %p211
        %p694 = pneg %p208
        %p695 = pneg %p232
        %p696 = pneg %p229
        %p697 = pneg %p253
        %p698 = pneg %p250
        %p699 = pneg %p274
        %p700 = pneg %p271
        %p701 = pneg %p295
        %p702 = pneg %p292
        %p703 = pneg %p316
        %p704 = pneg %p313
        %p705 = pneg %p337
        %p706 = pneg %p334
        %p707 = pneg %p358
        %p708 = pneg %p355
        %p709 = pneg %p384
        %p710 = pneg %p381
        %s711 = sand.u32 %s371, 1
        %s712 = scalar_lea.sflag [#allocation5], %s711
        %s713 = sand.u32 %s371, 1
        %s714 = scalar_lea.vmem [#allocation25], %s713
        %v715 = vld [vmem:[#allocation10] sm:$0xff]
        %v716 = vld [vmem:[#allocation10 + $0x8] sm:$0xff]
        %v717 = vld [vmem:[#allocation10 + $0x10] sm:$0xff]
        %v718 = vld [vmem:[#allocation10 + $0x18] sm:$0xff]
        %v719 = vld [vmem:[#allocation3] sm:$0xf]
        %v720 = vld [vmem:[#allocation11] sm:$0xff]
        %v721 = vld [vmem:[#allocation11 + $0x8] sm:$0xff]
        %v722 = vld [vmem:[#allocation11 + $0x10] sm:$0xff]
        %v723 = vld [vmem:[#allocation11 + $0x18] sm:$0xff]
        %725 = vset.pattern.permute.xlu0 0
        %726 = vperm.xlu0 %725, %v720
        %v727 = vpop.permute.xlu0 %726
        %730 = vset.pattern.permute.xlu0 0
        %731 = vperm.xlu0 %730, %v721
        %v732 = vpop.permute.xlu0 %731
        %735 = vset.pattern.permute.xlu0 0
        %736 = vperm.xlu0 %735, %v722
        %v737 = vpop.permute.xlu0 %736
        %740 = vset.pattern.permute.xlu0 0
        %741 = vperm.xlu0 %740, %v723
        %v742 = vpop.permute.xlu0 %741
        %vm744 = vcmask 31744
        %v746 = vsel %vm744, %v715, 0
        %v749 = vsel %vm744, %v716, 0
        %v752 = vsel %vm744, %v717, 0
        %v755 = vsel %vm744, %v718, 0
        %vm757 = vcmask 1043456
        %v759 = vsel %vm757, %v719, 0
        %761 = vmatprep.subr.mxu0 0.0
        %762 = vmatpush1.msra.mxu0 %v759
        %763 = vmatprep.subr.mxu0 0.0
        %764 = vmatpush1.msra.mxu0 0.0
        %765 = vmatprep.subr.mxu0 0.0
        %766 = vmatpush1.msra.mxu0 0.0
        %767 = vmatprep.subr.mxu0 0.0
        %768 = vmatpush1.msra.mxu0 0.0
        %769 = vmatprep.subr.mxu0 0.0
        %770 = vmatpush1.msra.mxu0 0.0
        %771 = vmatprep.subr.mxu0 0.0
        %772 = vmatpush1.msra.mxu0 0.0
        %773 = vmatprep.subr.mxu0 0.0
        %774 = vmatpush1.msra.mxu0 0.0
        %775 = vmatprep.subr.mxu0 0.0
        %776 = vmatpush1.msra.mxu0 0.0
        %777 = vmatprep.subr.mxu0 0.0
        %778 = vmatpush1.msra.mxu0 0.0
        %779 = vmatprep.subr.mxu0 0.0
        %780 = vmatpush1.msra.mxu0 0.0
        %781 = vmatprep.subr.mxu0 0.0
        %782 = vmatpush1.msra.mxu0 0.0
        %783 = vmatprep.subr.mxu0 0.0
        %784 = vmatpush1.msra.mxu0 0.0
        %785 = vmatprep.subr.mxu0 0.0
        %786 = vmatpush1.msra.mxu0 0.0
        %787 = vmatprep.subr.mxu0 0.0
        %788 = vmatpush1.msra.mxu0 0.0
        %789 = vmatprep.subr.mxu0 0.0
        %790 = vmatpush1.msra.mxu0 0.0
        %791 = vmatprep.subr.mxu0 0.0
        %792 = vmatpush1.msra.mxu0 0.0
        %793 = vmatprep.subr.mxu0 0.0
        %794 = vmatpush1.msra.mxu0 0.0
        %795 = vmatprep.subr.mxu0 0.0
        %796 = vmatpush1.msra.mxu0 0.0
        %797 = vmatprep.subr.mxu0 0.0
        %798 = vmatpush1.msra.mxu0 0.0
        %799 = vmatprep.subr.mxu0 0.0
        %800 = vmatpush1.msra.mxu0 0.0
        %801 = vmatprep.subr.mxu0 0.0
        %802 = vmatpush1.msra.mxu0 0.0
        %803 = vmatprep.subr.mxu0 0.0
        %804 = vmatpush1.msra.mxu0 0.0
        %805 = vmatprep.subr.mxu0 0.0
        %806 = vmatpush1.msra.mxu0 0.0
        %807 = vmatprep.subr.mxu0 0.0
        %808 = vmatpush1.msra.mxu0 0.0
        %809 = vmatprep.subr.mxu0 0.0
        %810 = vmatpush1.msra.mxu0 0.0
        %811 = vmatprep.subr.mxu0 0.0
        %812 = vmatpush1.msra.mxu0 0.0
        %813 = vmatprep.subr.mxu0 0.0
        %814 = vmatpush1.msra.mxu0 0.0
        %815 = vmatprep.subr.mxu0 0.0
        %816 = vmatpush1.msra.mxu0 0.0
        %817 = vmatprep.subr.mxu0 0.0
        %818 = vmatpush1.msra.mxu0 0.0
        %819 = vmatprep.subr.mxu0 0.0
        %820 = vmatpush1.msra.mxu0 0.0
        %821 = vmatprep.subr.mxu0 0.0
        %822 = vmatpush1.msra.mxu0 0.0
        %823 = vmatprep.subr.mxu0 0.0
        %824 = vmatpush1.msra.mxu0 0.0
        %825 = vmatprep.mubr.f32.mxu0 0.0
        %826 = vmatmul.mubr.f32.gmra.mrb[0].mxu0 %v746
        %v827 = vpop.f32.mrb[0].mxu0
        %v828 = vadd.f32 %v727, %v827
        %v829 = vpop.f32.mrb[0].mxu0
        %830 = vmatprep.mubr.f32.mxu0 0.0
        %831 = vmatmul.mubr.f32.gmra.mrb[0].mxu0 %v749
        %v832 = vpop.f32.mrb[0].mxu0
        %v833 = vadd.f32 %v732, %v832
        %v834 = vpop.f32.mrb[0].mxu0
        %835 = vmatprep.mubr.f32.mxu0 0.0
        %836 = vmatmul.mubr.f32.gmra.mrb[0].mxu0 %v752
        %v837 = vpop.f32.mrb[0].mxu0
        %v838 = vadd.f32 %v737, %v837
        %v839 = vpop.f32.mrb[0].mxu0
        %840 = vmatprep.mubr.f32.mxu0 0.0
        %841 = vmatmul.mubr.f32.gmra.mrb[0].mxu0 %v755
        %v842 = vpop.f32.mrb[0].mxu0
        %v843 = vadd.f32 %v742, %v842
        %v844 = vpop.f32.mrb[0].mxu0
        %845 = vdwg.mxu0
        %v846 = vld [vmem:[#allocation6] sm:$0xff]
        %v847 = vld [vmem:[#allocation6 + $0x8] sm:$0xff]
        %v848 = vld [vmem:[#allocation6 + $0x10] sm:$0xff]
        %v849 = vld [vmem:[#allocation6 + $0x18] sm:$0xff]
        %v850 = vld [vmem:[#allocation6 + $0x20] sm:$0xff]
        %v851 = vld [vmem:[#allocation6 + $0x28] sm:$0xff]
        %v852 = vld [vmem:[#allocation6 + $0x30] sm:$0xff]
        %v853 = vld [vmem:[#allocation6 + $0x38] sm:$0xff]
        %v854 = vld [vmem:[%s615] sm:$0xff]
        %v855 = vld [vmem:[%s615 + $0x8] sm:$0xff]
        %v856 = vld [vmem:[%s615 + $0x10] sm:$0xff]
        %v857 = vld [vmem:[%s615 + $0x18] sm:$0xff]
        %v858 = vld [vmem:[%s615 + $0x20] sm:$0xff]
        %v859 = vld [vmem:[%s615 + $0x28] sm:$0xff]
        %v860 = vld [vmem:[%s615 + $0x30] sm:$0xff]
        %v861 = vld [vmem:[%s615 + $0x38] sm:$0xff]
        %v862 = vld [vmem:[%s615 + $0x40] sm:$0xff]
        %v863 = vld [vmem:[%s615 + $0x48] sm:$0xff]
        %v864 = vld [vmem:[%s615 + $0x50] sm:$0xff]
        %v865 = vld [vmem:[%s615 + $0x58] sm:$0xff]
        %v866 = vld [vmem:[%s615 + $0x60] sm:$0xff]
        %v867 = vld [vmem:[%s615 + $0x68] sm:$0xff]
        %v868 = vld [vmem:[%s615 + $0x70] sm:$0xff]
        %v869 = vld [vmem:[%s615 + $0x78] sm:$0xff]
        %v870 = vld [vmem:[#allocation20] sm:$0xff]
        %v871 = vld [vmem:[#allocation20 + $0x8] sm:$0xff]
        %v872 = vld [vmem:[#allocation20 + $0x10] sm:$0xff]
        %v873 = vld [vmem:[#allocation20 + $0x18] sm:$0xff]
        %v874 = vld [vmem:[#allocation20 + $0x20] sm:$0xff]
        %v875 = vld [vmem:[#allocation20 + $0x28] sm:$0xff]
        %v876 = vld [vmem:[#allocation20 + $0x30] sm:$0xff]
        %v877 = vld [vmem:[#allocation20 + $0x38] sm:$0xff]
        %v878 = vld [vmem:[#allocation20 + $0x40] sm:$0xff]
        %v879 = vld [vmem:[#allocation20 + $0x48] sm:$0xff]
        %v880 = vld [vmem:[#allocation20 + $0x50] sm:$0xff]
        %v881 = vld [vmem:[#allocation20 + $0x58] sm:$0xff]
        %v882 = vld [vmem:[%s624] sm:$0x3]
        %v883 = vld [vmem:[#allocation22] sm:$0xff]
        %v884 = vld [vmem:[#allocation22 + $0x8] sm:$0xff]
        %v885 = vld [vmem:[#allocation22 + $0x10] sm:$0xff]
        %v886 = vld [vmem:[#allocation22 + $0x18] sm:$0xff]
        %v887 = vld [vmem:[#allocation22 + $0x20] sm:$0xff]
        %v888 = vld [vmem:[#allocation22 + $0x28] sm:$0xff]
        %v889 = vld [vmem:[#allocation22 + $0x30] sm:$0xff]
        %v890 = vld [vmem:[#allocation22 + $0x38] sm:$0xff]
        %v891 = vld [vmem:[#allocation22 + $0x40] sm:$0xff]
        %v892 = vld [vmem:[#allocation22 + $0x48] sm:$0xff]
        %v893 = vld [vmem:[#allocation22 + $0x50] sm:$0xff]
        %v894 = vld [vmem:[#allocation22 + $0x58] sm:$0xff]
        %896 = vset.pattern.permute.xlu0 0
        %897 = vperm.xlu0 %896, %v883
        %v898 = vpop.permute.xlu0 %897
        %901 = vset.pattern.permute.xlu0 0
        %902 = vperm.xlu0 %901, %v884
        %v903 = vpop.permute.xlu0 %902
        %906 = vset.pattern.permute.xlu0 0
        %907 = vperm.xlu0 %906, %v885
        %v908 = vpop.permute.xlu0 %907
        %911 = vset.pattern.permute.xlu0 0
        %912 = vperm.xlu0 %911, %v886
        %v913 = vpop.permute.xlu0 %912
        %916 = vset.pattern.permute.xlu0 0
        %917 = vperm.xlu0 %916, %v887
        %v918 = vpop.permute.xlu0 %917
        %921 = vset.pattern.permute.xlu0 0
        %922 = vperm.xlu0 %921, %v888
        %v923 = vpop.permute.xlu0 %922
        %926 = vset.pattern.permute.xlu0 0
        %927 = vperm.xlu0 %926, %v889
        %v928 = vpop.permute.xlu0 %927
        %931 = vset.pattern.permute.xlu0 0
        %932 = vperm.xlu0 %931, %v890
        %v933 = vpop.permute.xlu0 %932
        %936 = vset.pattern.permute.xlu0 0
        %937 = vperm.xlu0 %936, %v891
        %v938 = vpop.permute.xlu0 %937
        %941 = vset.pattern.permute.xlu0 0
        %942 = vperm.xlu0 %941, %v892
        %v943 = vpop.permute.xlu0 %942
        %946 = vset.pattern.permute.xlu0 0
        %947 = vperm.xlu0 %946, %v893
        %v948 = vpop.permute.xlu0 %947
        %951 = vset.pattern.permute.xlu0 0
        %952 = vperm.xlu0 %951, %v894
        %v953 = vpop.permute.xlu0 %952
        %vm955 = vcmask 15360
        %v957 = vsel %vm955, %v870, 0
        %v960 = vsel %vm955, %v871, 0
        %v963 = vsel %vm955, %v872, 0
        %v966 = vsel %vm955, %v873, 0
        %v969 = vsel %vm955, %v874, 0
        %v972 = vsel %vm955, %v875, 0
        %v975 = vsel %vm955, %v876, 0
        %v978 = vsel %vm955, %v877, 0
        %v981 = vsel %vm955, %v878, 0
        %v984 = vsel %vm955, %v879, 0
        %v987 = vsel %vm955, %v880, 0
        %v990 = vsel %vm955, %v881, 0
        %vm992 = vcmask 1041408
        %v994 = vsel %vm992, %v882, 0
        %996 = vmatprep.subr.mxu0 0.0
        %997 = vmatpush1.msra.mxu0 %v994
        %998 = vmatprep.subr.mxu0 0.0
        %999 = vmatpush1.msra.mxu0 0.0
        %1000 = vmatprep.subr.mxu0 0.0
        %1001 = vmatpush1.msra.mxu0 0.0
        %1002 = vmatprep.subr.mxu0 0.0
        %1003 = vmatpush1.msra.mxu0 0.0
        %1004 = vmatprep.subr.mxu0 0.0
        %1005 = vmatpush1.msra.mxu0 0.0
        %1006 = vmatprep.subr.mxu0 0.0
        %1007 = vmatpush1.msra.mxu0 0.0
        %1008 = vmatprep.subr.mxu0 0.0
        %1009 = vmatpush1.msra.mxu0 0.0
        %1010 = vmatprep.subr.mxu0 0.0
        %1011 = vmatpush1.msra.mxu0 0.0
        %1012 = vmatprep.subr.mxu0 0.0
        %1013 = vmatpush1.msra.mxu0 0.0
        %1014 = vmatprep.subr.mxu0 0.0
        %1015 = vmatpush1.msra.mxu0 0.0
        %1016 = vmatprep.subr.mxu0 0.0
        %1017 = vmatpush1.msra.mxu0 0.0
        %1018 = vmatprep.subr.mxu0 0.0
        %1019 = vmatpush1.msra.mxu0 0.0
        %1020 = vmatprep.subr.mxu0 0.0
        %1021 = vmatpush1.msra.mxu0 0.0
        %1022 = vmatprep.subr.mxu0 0.0
        %1023 = vmatpush1.msra.mxu0 0.0
        %1024 = vmatprep.subr.mxu0 0.0
        %1025 = vmatpush1.msra.mxu0 0.0
        %1026 = vmatprep.subr.mxu0 0.0
        %1027 = vmatpush1.msra.mxu0 0.0
        %1028 = vmatprep.subr.mxu0 0.0
        %1029 = vmatpush1.msra.mxu0 0.0
        %1030 = vmatprep.subr.mxu0 0.0
        %1031 = vmatpush1.msra.mxu0 0.0
        %1032 = vmatprep.subr.mxu0 0.0
        %1033 = vmatpush1.msra.mxu0 0.0
        %1034 = vmatprep.subr.mxu0 0.0
        %1035 = vmatpush1.msra.mxu0 0.0
        %1036 = vmatprep.subr.mxu0 0.0
        %1037 = vmatpush1.msra.mxu0 0.0
        %1038 = vmatprep.subr.mxu0 0.0
        %1039 = vmatpush1.msra.mxu0 0.0
        %1040 = vmatprep.subr.mxu0 0.0
        %1041 = vmatpush1.msra.mxu0 0.0
        %1042 = vmatprep.subr.mxu0 0.0
        %1043 = vmatpush1.msra.mxu0 0.0
        %1044 = vmatprep.subr.mxu0 0.0
        %1045 = vmatpush1.msra.mxu0 0.0
        %1046 = vmatprep.subr.mxu0 0.0
        %1047 = vmatpush1.msra.mxu0 0.0
        %1048 = vmatprep.subr.mxu0 0.0
        %1049 = vmatpush1.msra.mxu0 0.0
        %1050 = vmatprep.subr.mxu0 0.0
        %1051 = vmatpush1.msra.mxu0 0.0
        %1052 = vmatprep.subr.mxu0 0.0
        %1053 = vmatpush1.msra.mxu0 0.0
        %1054 = vmatprep.subr.mxu0 0.0
        %1055 = vmatpush1.msra.mxu0 0.0
        %1056 = vmatprep.subr.mxu0 0.0
        %1057 = vmatpush1.msra.mxu0 0.0
        %1058 = vmatprep.subr.mxu0 0.0
        %1059 = vmatpush1.msra.mxu0 0.0
        %1060 = vmatprep.mubr.f32.mxu0 0.0
        %1061 = vmatmul.mubr.f32.gmra.mrb[0].mxu0 %v957
        %v1062 = vpop.f32.mrb[0].mxu0
        %v1063 = vadd.f32 %v898, %v1062
        %v1064 = vpop.f32.mrb[0].mxu0
        %1065 = vmatprep.mubr.f32.mxu0 0.0
        %1066 = vmatmul.mubr.f32.gmra.mrb[0].mxu0 %v960
        %v1067 = vpop.f32.mrb[0].mxu0
        %v1068 = vadd.f32 %v903, %v1067
        %v1069 = vpop.f32.mrb[0].mxu0
        %1070 = vmatprep.mubr.f32.mxu0 0.0
        %1071 = vmatmul.mubr.f32.gmra.mrb[0].mxu0 %v963
        %v1072 = vpop.f32.mrb[0].mxu0
        %v1073 = vadd.f32 %v908, %v1072
        %v1074 = vpop.f32.mrb[0].mxu0
        %1075 = vmatprep.mubr.f32.mxu0 0.0
        %1076 = vmatmul.mubr.f32.gmra.mrb[0].mxu0 %v966
        %v1077 = vpop.f32.mrb[0].mxu0
        %v1078 = vadd.f32 %v913, %v1077
        %v1079 = vpop.f32.mrb[0].mxu0
        %1080 = vmatprep.mubr.f32.mxu0 0.0
        %1081 = vmatmul.mubr.f32.gmra.mrb[0].mxu0 %v969
        %v1082 = vpop.f32.mrb[0].mxu0
        %v1083 = vadd.f32 %v918, %v1082
        %v1084 = vpop.f32.mrb[0].mxu0
        %1085 = vmatprep.mubr.f32.mxu0 0.0
        %1086 = vmatmul.mubr.f32.gmra.mrb[0].mxu0 %v972
        %v1087 = vpop.f32.mrb[0].mxu0
        %v1088 = vadd.f32 %v923, %v1087
        %v1089 = vpop.f32.mrb[0].mxu0
        %1090 = vmatprep.mubr.f32.mxu0 0.0
        %1091 = vmatmul.mubr.f32.gmra.mrb[0].mxu0 %v975
        %v1092 = vpop.f32.mrb[0].mxu0
        %v1093 = vadd.f32 %v928, %v1092
        %v1094 = vpop.f32.mrb[0].mxu0
        %1095 = vmatprep.mubr.f32.mxu0 0.0
        %1096 = vmatmul.mubr.f32.gmra.mrb[0].mxu0 %v978
        %v1097 = vpop.f32.mrb[0].mxu0
        %v1098 = vadd.f32 %v933, %v1097
        %v1099 = vpop.f32.mrb[0].mxu0
        %1100 = vmatprep.mubr.f32.mxu0 0.0
        %1101 = vmatmul.mubr.f32.gmra.mrb[0].mxu0 %v981
        %v1102 = vpop.f32.mrb[0].mxu0
        %v1103 = vadd.f32 %v938, %v1102
        %v1104 = vpop.f32.mrb[0].mxu0
        %1105 = vmatprep.mubr.f32.mxu0 0.0
        %1106 = vmatmul.mubr.f32.gmra.mrb[0].mxu0 %v984
        %v1107 = vpop.f32.mrb[0].mxu0
        %v1108 = vadd.f32 %v943, %v1107
        %v1109 = vpop.f32.mrb[0].mxu0
        %1110 = vmatprep.mubr.f32.mxu0 0.0
        %1111 = vmatmul.mubr.f32.gmra.mrb[0].mxu0 %v987
        %v1112 = vpop.f32.mrb[0].mxu0
        %v1113 = vadd.f32 %v948, %v1112
        %v1114 = vpop.f32.mrb[0].mxu0
        %1115 = vmatprep.mubr.f32.mxu0 0.0
        %1116 = vmatmul.mubr.f32.gmra.mrb[0].mxu0 %v990
        %v1117 = vpop.f32.mrb[0].mxu0
        %v1118 = vadd.f32 %v953, %v1117
        %v1119 = vpop.f32.mrb[0].mxu0
        %1120 = vdwg.mxu0
        %v1121 = vld [vmem:[#allocation19] sm:$0xff]
        %v1122 = vld [vmem:[#allocation19 + $0x8] sm:$0xff]
        %v1123 = vld [vmem:[#allocation19 + $0x10] sm:$0xff]
        %v1124 = vld [vmem:[#allocation19 + $0x18] sm:$0xff]
        %v1125 = vld [vmem:[#allocation19 + $0x20] sm:$0xff]
        %v1126 = vld [vmem:[#allocation19 + $0x28] sm:$0xff]
        %v1127 = vld [vmem:[#allocation19 + $0x30] sm:$0xff]
        %v1128 = vld [vmem:[#allocation19 + $0x38] sm:$0xff]
        %vm1129 = vcmask 261120
        %v1131 = vsel %vm1129, %v1121, 0
        %v1134 = vsel %vm1129, %v1122, 0
        %v1137 = vsel %vm1129, %v1123, 0
        %v1140 = vsel %vm1129, %v1124, 0
        %v1143 = vsel %vm1129, %v1125, 0
        %v1146 = vsel %vm1129, %v1126, 0
        %v1149 = vsel %vm1129, %v1127, 0
        %v1152 = vsel %vm1129, %v1128, 0
        %1154 = vmatprep.subr.mxu0 0.0
        %1155 = vmatpush1.msra.mxu0 %v828
        %1156 = vmatprep.subr.mxu0 0.0
        %1157 = vmatpush1.msra.mxu0 %v833
        %1158 = vmatprep.subr.mxu0 0.0
        %1159 = vmatpush1.msra.mxu0 %v838
        %1160 = vmatprep.subr.mxu0 0.0
        %1161 = vmatpush1.msra.mxu0 %v843
        %1162 = vmatprep.subr.mxu0 0.0
        %1163 = vmatpush1.msra.mxu0 0.0
        %1164 = vmatprep.subr.mxu0 0.0
        %1165 = vmatpush1.msra.mxu0 0.0
        %1166 = vmatprep.subr.mxu0 0.0
        %1167 = vmatpush1.msra.mxu0 0.0
        %1168 = vmatprep.subr.mxu0 0.0
        %1169 = vmatpush1.msra.mxu0 0.0
        %1170 = vmatprep.subr.mxu0 0.0
        %1171 = vmatpush1.msra.mxu0 0.0
        %1172 = vmatprep.subr.mxu0 0.0
        %1173 = vmatpush1.msra.mxu0 0.0
        %1174 = vmatprep.subr.mxu0 0.0
        %1175 = vmatpush1.msra.mxu0 0.0
        %1176 = vmatprep.subr.mxu0 0.0
        %1177 = vmatpush1.msra.mxu0 0.0
        %1178 = vmatprep.subr.mxu0 0.0
        %1179 = vmatpush1.msra.mxu0 0.0
        %1180 = vmatprep.subr.mxu0 0.0
        %1181 = vmatpush1.msra.mxu0 0.0
        %1182 = vmatprep.subr.mxu0 0.0
        %1183 = vmatpush1.msra.mxu0 0.0
        %1184 = vmatprep.subr.mxu0 0.0
        %1185 = vmatpush1.msra.mxu0 0.0
        %1186 = vmatprep.subr.mxu0 0.0
        %1187 = vmatpush1.msra.mxu0 0.0
        %1188 = vmatprep.subr.mxu0 0.0
        %1189 = vmatpush1.msra.mxu0 0.0
        %1190 = vmatprep.subr.mxu0 0.0
        %1191 = vmatpush1.msra.mxu0 0.0
        %1192 = vmatprep.subr.mxu0 0.0
        %1193 = vmatpush1.msra.mxu0 0.0
        %1194 = vmatprep.subr.mxu0 0.0
        %1195 = vmatpush1.msra.mxu0 0.0
        %1196 = vmatprep.subr.mxu0 0.0
        %1197 = vmatpush1.msra.mxu0 0.0
        %1198 = vmatprep.subr.mxu0 0.0
        %1199 = vmatpush1.msra.mxu0 0.0
        %1200 = vmatprep.subr.mxu0 0.0
        %1201 = vmatpush1.msra.mxu0 0.0
        %1202 = vmatprep.subr.mxu0 0.0
        %1203 = vmatpush1.msra.mxu0 0.0
        %1204 = vmatprep.subr.mxu0 0.0
        %1205 = vmatpush1.msra.mxu0 0.0
        %1206 = vmatprep.subr.mxu0 0.0
        %1207 = vmatpush1.msra.mxu0 0.0
        %1208 = vmatprep.subr.mxu0 0.0
        %1209 = vmatpush1.msra.mxu0 0.0
        %1210 = vmatprep.subr.mxu0 0.0
        %1211 = vmatpush1.msra.mxu0 0.0
        %1212 = vmatprep.subr.mxu0 0.0
        %1213 = vmatpush1.msra.mxu0 0.0
        %1214 = vmatprep.subr.mxu0 0.0
        %1215 = vmatpush1.msra.mxu0 0.0
        %1216 = vmatprep.subr.mxu0 0.0
        %1217 = vmatpush1.msra.mxu0 0.0
        %1218 = vmatprep.mubr.f32.mxu0 0.0
        %1219 = vmatmul.mubr.f32.gmra.mrb[0].mxu0 %v1131
        %v1220 = vpop.f32.mrb[0].mxu0
        %v1221 = vadd.f32 0.0, %v1220
        %v1222 = vpop.f32.mrb[0].mxu0
        %1223 = vmatprep.mubr.f32.mxu0 0.0
        %1224 = vmatmul.mubr.f32.gmra.mrb[0].mxu0 %v1134
        %v1225 = vpop.f32.mrb[0].mxu0
        %v1226 = vadd.f32 0.0, %v1225
        %v1227 = vpop.f32.mrb[0].mxu0
        %1228 = vmatprep.mubr.f32.mxu0 0.0
        %1229 = vmatmul.mubr.f32.gmra.mrb[0].mxu0 %v1137
        %v1230 = vpop.f32.mrb[0].mxu0
        %v1231 = vadd.f32 0.0, %v1230
        %v1232 = vpop.f32.mrb[0].mxu0
        %1233 = vmatprep.mubr.f32.mxu0 0.0
        %1234 = vmatmul.mubr.f32.gmra.mrb[0].mxu0 %v1140
        %v1235 = vpop.f32.mrb[0].mxu0
        %v1236 = vadd.f32 0.0, %v1235
        %v1237 = vpop.f32.mrb[0].mxu0
        %1238 = vmatprep.mubr.f32.mxu0 0.0
        %1239 = vmatmul.mubr.f32.gmra.mrb[0].mxu0 %v1143
        %v1240 = vpop.f32.mrb[0].mxu0
        %v1241 = vadd.f32 0.0, %v1240
        %v1242 = vpop.f32.mrb[0].mxu0
        %1243 = vmatprep.mubr.f32.mxu0 0.0
        %1244 = vmatmul.mubr.f32.gmra.mrb[0].mxu0 %v1146
        %v1245 = vpop.f32.mrb[0].mxu0
        %v1246 = vadd.f32 0.0, %v1245
        %v1247 = vpop.f32.mrb[0].mxu0
        %1248 = vmatprep.mubr.f32.mxu0 0.0
        %1249 = vmatmul.mubr.f32.gmra.mrb[0].mxu0 %v1149
        %v1250 = vpop.f32.mrb[0].mxu0
        %v1251 = vadd.f32 0.0, %v1250
        %v1252 = vpop.f32.mrb[0].mxu0
        %1253 = vmatprep.mubr.f32.mxu0 0.0
        %1254 = vmatmul.mubr.f32.gmra.mrb[0].mxu0 %v1152
        %v1255 = vpop.f32.mrb[0].mxu0
        %v1256 = vadd.f32 0.0, %v1255
        %v1257 = vpop.f32.mrb[0].mxu0
        %1258 = vdwg.mxu0
        %1263 = vrot.lane.b32.xlu0 %v1241, 64
        %v1264 = vpop.permute.xlu0 %1263
        %1265 = vrot.lane.b32.xlu0 %v1246, 64
        %v1266 = vpop.permute.xlu0 %1265
        %1267 = vrot.lane.b32.xlu0 %v1251, 64
        %v1268 = vpop.permute.xlu0 %1267
        %1269 = vrot.lane.b32.xlu0 %v1256, 64
        %v1270 = vpop.permute.xlu0 %1269
        %vm1275 = vcmask 523264
        %v1276 = vsel %vm1275, %v1221, %v1264
        %v1277 = vsel %vm1275, %v1226, %v1266
        %v1278 = vsel %vm1275, %v1231, %v1268
        %v1279 = vsel %vm1275, %v1236, %v1270
        %1280 = vmatprep.subr.mxu0 0.0
        %1281 = vmatpush1.msra.mxu0 %v854
        %1282 = vmatprep.subr.mxu0 0.0
        %1283 = vmatpush1.msra.mxu0 %v855
        %1284 = vmatprep.subr.mxu0 0.0
        %1285 = vmatpush1.msra.mxu0 %v856
        %1286 = vmatprep.subr.mxu0 0.0
        %1287 = vmatpush1.msra.mxu0 %v857
        %1288 = vmatprep.subr.mxu0 0.0
        %1289 = vmatpush1.msra.mxu0 %v858
        %1290 = vmatprep.subr.mxu0 0.0
        %1291 = vmatpush1.msra.mxu0 %v859
        %1292 = vmatprep.subr.mxu0 0.0
        %1293 = vmatpush1.msra.mxu0 %v860
        %1294 = vmatprep.subr.mxu0 0.0
        %1295 = vmatpush1.msra.mxu0 %v861
        %1296 = vmatprep.subr.mxu0 0.0
        %1297 = vmatpush1.msra.mxu0 %v862
        %1298 = vmatprep.subr.mxu0 0.0
        %1299 = vmatpush1.msra.mxu0 %v863
        %1300 = vmatprep.subr.mxu0 0.0
        %1301 = vmatpush1.msra.mxu0 %v864
        %1302 = vmatprep.subr.mxu0 0.0
        %1303 = vmatpush1.msra.mxu0 %v865
        %1304 = vmatprep.subr.mxu0 0.0
        %1305 = vmatpush1.msra.mxu0 %v866
        %1306 = vmatprep.subr.mxu0 0.0
        %1307 = vmatpush1.msra.mxu0 %v867
        %1308 = vmatprep.subr.mxu0 0.0
        %1309 = vmatpush1.msra.mxu0 %v868
        %1310 = vmatprep.subr.mxu0 0.0
        %1311 = vmatpush1.msra.mxu0 %v869
        %1312 = vmatprep.subr.mxu0 0.0
        %1313 = vmatpush1.msra.mxu0 0.0
        %1314 = vmatprep.subr.mxu0 0.0
        %1315 = vmatpush1.msra.mxu0 0.0
        %1316 = vmatprep.subr.mxu0 0.0
        %1317 = vmatpush1.msra.mxu0 0.0
        %1318 = vmatprep.subr.mxu0 0.0
        %1319 = vmatpush1.msra.mxu0 0.0
        %1320 = vmatprep.subr.mxu0 0.0
        %1321 = vmatpush1.msra.mxu0 0.0
        %1322 = vmatprep.subr.mxu0 0.0
        %1323 = vmatpush1.msra.mxu0 0.0
        %1324 = vmatprep.subr.mxu0 0.0
        %1325 = vmatpush1.msra.mxu0 0.0
        %1326 = vmatprep.subr.mxu0 0.0
        %1327 = vmatpush1.msra.mxu0 0.0
        %1328 = vmatprep.subr.mxu0 0.0
        %1329 = vmatpush1.msra.mxu0 0.0
        %1330 = vmatprep.subr.mxu0 0.0
        %1331 = vmatpush1.msra.mxu0 0.0
        %1332 = vmatprep.subr.mxu0 0.0
        %1333 = vmatpush1.msra.mxu0 0.0
        %1334 = vmatprep.subr.mxu0 0.0
        %1335 = vmatpush1.msra.mxu0 0.0
        %1336 = vmatprep.subr.mxu0 0.0
        %1337 = vmatpush1.msra.mxu0 0.0
        %1338 = vmatprep.subr.mxu0 0.0
        %1339 = vmatpush1.msra.mxu0 0.0
        %1340 = vmatprep.subr.mxu0 0.0
        %1341 = vmatpush1.msra.mxu0 0.0
        %1342 = vmatprep.subr.mxu0 0.0
        %1343 = vmatpush1.msra.mxu0 0.0
        %1344 = vmatprep.mubr.f32.mxu0 0.0
        %1345 = vmatmul.mubr.f32.gmra.mrb[0].mxu0 %v1276
        %v1346 = vpop.f32.mrb[0].mxu0
        %v1347 = vadd.f32 %v1063, %v1346
        %v1348 = vpop.f32.mrb[0].mxu0
        %1349 = vmatprep.mubr.f32.mxu0 0.0
        %1350 = vmatmul.mubr.f32.gmra.mrb[0].mxu0 %v1277
        %v1351 = vpop.f32.mrb[0].mxu0
        %v1352 = vadd.f32 %v1068, %v1351
        %v1353 = vpop.f32.mrb[0].mxu0
        %1354 = vmatprep.mubr.f32.mxu0 0.0
        %1355 = vmatmul.mubr.f32.gmra.mrb[0].mxu0 %v1278
        %v1356 = vpop.f32.mrb[0].mxu0
        %v1357 = vadd.f32 %v1073, %v1356
        %v1358 = vpop.f32.mrb[0].mxu0
        %1359 = vmatprep.mubr.f32.mxu0 0.0
        %1360 = vmatmul.mubr.f32.gmra.mrb[0].mxu0 %v1279
        %v1361 = vpop.f32.mrb[0].mxu0
        %v1362 = vadd.f32 %v1078, %v1361
        %v1363 = vpop.f32.mrb[0].mxu0
        %1364 = vdwg.mxu0
        %v1365 = vmax.f32 %v1347, 0.0
        %v1366 = vmax.f32 %v1352, 0.0
        %v1367 = vmax.f32 %v1357, 0.0
        %v1368 = vmax.f32 %v1362, 0.0
        %v1370 = vsel %vm1275, %v828, 0
        %v1373 = vsel %vm1275, %v833, 0
        %v1376 = vsel %vm1275, %v838, 0
        %v1379 = vsel %vm1275, %v843, 0
        %1381 = vmatprep.subr.mxu0 0.0
        %1382 = vmatpush1.msra.mxu0 %v846
        %1383 = vmatprep.subr.mxu0 0.0
        %1384 = vmatpush1.msra.mxu0 %v847
        %1385 = vmatprep.subr.mxu0 0.0
        %1386 = vmatpush1.msra.mxu0 %v848
        %1387 = vmatprep.subr.mxu0 0.0
        %1388 = vmatpush1.msra.mxu0 %v849
        %1389 = vmatprep.subr.mxu0 0.0
        %1390 = vmatpush1.msra.mxu0 %v850
        %1391 = vmatprep.subr.mxu0 0.0
        %1392 = vmatpush1.msra.mxu0 %v851
        %1393 = vmatprep.subr.mxu0 0.0
        %1394 = vmatpush1.msra.mxu0 %v852
        %1395 = vmatprep.subr.mxu0 0.0
        %1396 = vmatpush1.msra.mxu0 %v853
        %1397 = vmatprep.subr.mxu0 0.0
        %1398 = vmatpush1.msra.mxu0 0.0
        %1399 = vmatprep.subr.mxu0 0.0
        %1400 = vmatpush1.msra.mxu0 0.0
        %1401 = vmatprep.subr.mxu0 0.0
        %1402 = vmatpush1.msra.mxu0 0.0
        %1403 = vmatprep.subr.mxu0 0.0
        %1404 = vmatpush1.msra.mxu0 0.0
        %1405 = vmatprep.subr.mxu0 0.0
        %1406 = vmatpush1.msra.mxu0 0.0
        %1407 = vmatprep.subr.mxu0 0.0
        %1408 = vmatpush1.msra.mxu0 0.0
        %1409 = vmatprep.subr.mxu0 0.0
        %1410 = vmatpush1.msra.mxu0 0.0
        %1411 = vmatprep.subr.mxu0 0.0
        %1412 = vmatpush1.msra.mxu0 0.0
        %1413 = vmatprep.subr.mxu0 0.0
        %1414 = vmatpush1.msra.mxu0 0.0
        %1415 = vmatprep.subr.mxu0 0.0
        %1416 = vmatpush1.msra.mxu0 0.0
        %1417 = vmatprep.subr.mxu0 0.0
        %1418 = vmatpush1.msra.mxu0 0.0
        %1419 = vmatprep.subr.mxu0 0.0
        %1420 = vmatpush1.msra.mxu0 0.0
        %1421 = vmatprep.subr.mxu0 0.0
        %1422 = vmatpush1.msra.mxu0 0.0
        %1423 = vmatprep.subr.mxu0 0.0
        %1424 = vmatpush1.msra.mxu0 0.0
        %1425 = vmatprep.subr.mxu0 0.0
        %1426 = vmatpush1.msra.mxu0 0.0
        %1427 = vmatprep.subr.mxu0 0.0
        %1428 = vmatpush1.msra.mxu0 0.0
        %1429 = vmatprep.subr.mxu0 0.0
        %1430 = vmatpush1.msra.mxu0 0.0
        %1431 = vmatprep.subr.mxu0 0.0
        %1432 = vmatpush1.msra.mxu0 0.0
        %1433 = vmatprep.subr.mxu0 0.0
        %1434 = vmatpush1.msra.mxu0 0.0
        %1435 = vmatprep.subr.mxu0 0.0
        %1436 = vmatpush1.msra.mxu0 0.0
        %1437 = vmatprep.subr.mxu0 0.0
        %1438 = vmatpush1.msra.mxu0 0.0
        %1439 = vmatprep.subr.mxu0 0.0
        %1440 = vmatpush1.msra.mxu0 0.0
        %1441 = vmatprep.subr.mxu0 0.0
        %1442 = vmatpush1.msra.mxu0 0.0
        %1443 = vmatprep.subr.mxu0 0.0
        %1444 = vmatpush1.msra.mxu0 0.0
        %1445 = vmatprep.mubr.f32.mxu0 0.0
        %1446 = vmatmul.mubr.f32.gmra.mrb[0].mxu0 %v1370
        %v1447 = vpop.f32.mrb[0].mxu0
        %v1448 = vadd.f32 0.0, %v1447
        %v1449 = vpop.f32.mrb[0].mxu0
        %1450 = vmatprep.mubr.f32.mxu0 0.0
        %1451 = vmatmul.mubr.f32.gmra.mrb[0].mxu0 %v1373
        %v1452 = vpop.f32.mrb[0].mxu0
        %v1453 = vadd.f32 0.0, %v1452
        %v1454 = vpop.f32.mrb[0].mxu0
        %1455 = vmatprep.mubr.f32.mxu0 0.0
        %1456 = vmatmul.mubr.f32.gmra.mrb[0].mxu0 %v1376
        %v1457 = vpop.f32.mrb[0].mxu0
        %v1458 = vadd.f32 0.0, %v1457
        %v1459 = vpop.f32.mrb[0].mxu0
        %1460 = vmatprep.mubr.f32.mxu0 0.0
        %1461 = vmatmul.mubr.f32.gmra.mrb[0].mxu0 %v1379
        %v1462 = vpop.f32.mrb[0].mxu0
        %v1463 = vadd.f32 0.0, %v1462
        %v1464 = vpop.f32.mrb[0].mxu0
        %1465 = vdwg.mxu0
        %v1466 = vadd.f32 %v828, %v1448
        %v1467 = vadd.f32 %v833, %v1453
        %v1468 = vadd.f32 %v838, %v1458
        %v1469 = vadd.f32 %v843, %v1463
        %v1470 = vld [vmem:[#allocation13] sm:$0xff]
        %v1471 = vld [vmem:[#allocation13 + $0x8] sm:$0xff]
        %v1472 = vld [vmem:[#allocation13 + $0x10] sm:$0xff]
        %v1473 = vld [vmem:[#allocation13 + $0x18] sm:$0xff]
        %v1474 = vld [vmem:[#allocation14] sm:$0xff]
        %v1475 = vld [vmem:[#allocation14 + $0x8] sm:$0xff]
        %v1476 = vld [vmem:[#allocation14 + $0x10] sm:$0xff]
        %v1477 = vld [vmem:[#allocation14 + $0x18] sm:$0xff]
        %1479 = vset.pattern.permute.xlu0 0
        %1480 = vperm.xlu0 %1479, %v1474
        %v1481 = vpop.permute.xlu0 %1480
        %1484 = vset.pattern.permute.xlu0 0
        %1485 = vperm.xlu0 %1484, %v1475
        %v1486 = vpop.permute.xlu0 %1485
        %1489 = vset.pattern.permute.xlu0 0
        %1490 = vperm.xlu0 %1489, %v1476
        %v1491 = vpop.permute.xlu0 %1490
        %1494 = vset.pattern.permute.xlu0 0
        %1495 = vperm.xlu0 %1494, %v1477
        %v1496 = vpop.permute.xlu0 %1495
        %v1499 = vsel %vm1129, %v1470, 0
        %v1502 = vsel %vm1129, %v1471, 0
        %v1505 = vsel %vm1129, %v1472, 0
        %v1508 = vsel %vm1129, %v1473, 0
        %1510 = vmatprep.subr.mxu0 0.0
        %1511 = vmatpush1.msra.mxu0 %v1466
        %1512 = vmatprep.subr.mxu0 0.0
        %1513 = vmatpush1.msra.mxu0 %v1467
        %1514 = vmatprep.subr.mxu0 0.0
        %1515 = vmatpush1.msra.mxu0 %v1468
        %1516 = vmatprep.subr.mxu0 0.0
        %1517 = vmatpush1.msra.mxu0 %v1469
        %1518 = vmatprep.subr.mxu0 0.0
        %1519 = vmatpush1.msra.mxu0 0.0
        %1520 = vmatprep.subr.mxu0 0.0
        %1521 = vmatpush1.msra.mxu0 0.0
        %1522 = vmatprep.subr.mxu0 0.0
        %1523 = vmatpush1.msra.mxu0 0.0
        %1524 = vmatprep.subr.mxu0 0.0
        %1525 = vmatpush1.msra.mxu0 0.0
        %1526 = vmatprep.subr.mxu0 0.0
        %1527 = vmatpush1.msra.mxu0 0.0
        %1528 = vmatprep.subr.mxu0 0.0
        %1529 = vmatpush1.msra.mxu0 0.0
        %1530 = vmatprep.subr.mxu0 0.0
        %1531 = vmatpush1.msra.mxu0 0.0
        %1532 = vmatprep.subr.mxu0 0.0
        %1533 = vmatpush1.msra.mxu0 0.0
        %1534 = vmatprep.subr.mxu0 0.0
        %1535 = vmatpush1.msra.mxu0 0.0
        %1536 = vmatprep.subr.mxu0 0.0
        %1537 = vmatpush1.msra.mxu0 0.0
        %1538 = vmatprep.subr.mxu0 0.0
        %1539 = vmatpush1.msra.mxu0 0.0
        %1540 = vmatprep.subr.mxu0 0.0
        %1541 = vmatpush1.msra.mxu0 0.0
        %1542 = vmatprep.subr.mxu0 0.0
        %1543 = vmatpush1.msra.mxu0 0.0
        %1544 = vmatprep.subr.mxu0 0.0
        %1545 = vmatpush1.msra.mxu0 0.0
        %1546 = vmatprep.subr.mxu0 0.0
        %1547 = vmatpush1.msra.mxu0 0.0
        %1548 = vmatprep.subr.mxu0 0.0
        %1549 = vmatpush1.msra.mxu0 0.0
        %1550 = vmatprep.subr.mxu0 0.0
        %1551 = vmatpush1.msra.mxu0 0.0
        %1552 = vmatprep.subr.mxu0 0.0
        %1553 = vmatpush1.msra.mxu0 0.0
        %1554 = vmatprep.subr.mxu0 0.0
        %1555 = vmatpush1.msra.mxu0 0.0
        %1556 = vmatprep.subr.mxu0 0.0
        %1557 = vmatpush1.msra.mxu0 0.0
        %1558 = vmatprep.subr.mxu0 0.0
        %1559 = vmatpush1.msra.mxu0 0.0
        %1560 = vmatprep.subr.mxu0 0.0
        %1561 = vmatpush1.msra.mxu0 0.0
        %1562 = vmatprep.subr.mxu0 0.0
        %1563 = vmatpush1.msra.mxu0 0.0
        %1564 = vmatprep.subr.mxu0 0.0
        %1565 = vmatpush1.msra.mxu0 0.0
        %1566 = vmatprep.subr.mxu0 0.0
        %1567 = vmatpush1.msra.mxu0 0.0
        %1568 = vmatprep.subr.mxu0 0.0
        %1569 = vmatpush1.msra.mxu0 0.0
        %1570 = vmatprep.subr.mxu0 0.0
        %1571 = vmatpush1.msra.mxu0 0.0
        %1572 = vmatprep.subr.mxu0 0.0
        %1573 = vmatpush1.msra.mxu0 0.0
        %1574 = vmatprep.mubr.f32.mxu0 0.0
        %1575 = vmatmul.mubr.f32.gmra.mrb[0].mxu0 %v1499
        %v1576 = vpop.f32.mrb[0].mxu0
        %v1577 = vadd.f32 %v1481, %v1576
        %v1578 = vpop.f32.mrb[0].mxu0
        %1579 = vmatprep.mubr.f32.mxu0 0.0
        %1580 = vmatmul.mubr.f32.gmra.mrb[0].mxu0 %v1502
        %v1581 = vpop.f32.mrb[0].mxu0
        %v1582 = vadd.f32 %v1486, %v1581
        %v1583 = vpop.f32.mrb[0].mxu0
        %1584 = vmatprep.mubr.f32.mxu0 0.0
        %1585 = vmatmul.mubr.f32.gmra.mrb[0].mxu0 %v1505
        %v1586 = vpop.f32.mrb[0].mxu0
        %v1587 = vadd.f32 %v1491, %v1586
        %v1588 = vpop.f32.mrb[0].mxu0
        %1589 = vmatprep.mubr.f32.mxu0 0.0
        %1590 = vmatmul.mubr.f32.gmra.mrb[0].mxu0 %v1508
        %v1591 = vpop.f32.mrb[0].mxu0
        %v1592 = vadd.f32 %v1496, %v1591
        %v1593 = vpop.f32.mrb[0].mxu0
        %1594 = vdwg.mxu0
        %v1595 = vmax.f32 %v1577, 0.0
        %v1596 = vmax.f32 %v1582, 0.0
        %v1597 = vmax.f32 %v1587, 0.0
        %v1598 = vmax.f32 %v1592, 0.0
        %v1599 = vld [vmem:[#allocation16] sm:$0xff]
        %v1600 = vld [vmem:[#allocation16 + $0x8] sm:$0xff]
        %v1601 = vld [vmem:[#allocation16 + $0x10] sm:$0xff]
        %v1602 = vld [vmem:[#allocation16 + $0x18] sm:$0xff]
        %1604 = vset.pattern.permute.xlu0 0
        %1605 = vperm.xlu0 %1604, %v1599
        %v1606 = vpop.permute.xlu0 %1605
        %1609 = vset.pattern.permute.xlu0 0
        %1610 = vperm.xlu0 %1609, %v1600
        %v1611 = vpop.permute.xlu0 %1610
        %1614 = vset.pattern.permute.xlu0 0
        %1615 = vperm.xlu0 %1614, %v1601
        %v1616 = vpop.permute.xlu0 %1615
        %1619 = vset.pattern.permute.xlu0 0
        %1620 = vperm.xlu0 %1619, %v1602
        %v1621 = vpop.permute.xlu0 %1620
        %v1623 = vmul.f32 %v1595, %v1606
        %v1624 = vmul.f32 %v1596, %v1611
        %v1625 = vmul.f32 %v1597, %v1616
        %v1626 = vmul.f32 %v1598, %v1621
        %v1627 = vld [vmem:[#allocation17] sm:$0xff]
        %v1628 = vld [vmem:[#allocation17 + $0x8] sm:$0xff]
        %v1629 = vld [vmem:[#allocation17 + $0x10] sm:$0xff]
        %v1630 = vld [vmem:[#allocation17 + $0x18] sm:$0xff]
        %1632 = vset.pattern.permute.xlu0 0
        %1633 = vperm.xlu0 %1632, %v1627
        %v1634 = vpop.permute.xlu0 %1633
        %1637 = vset.pattern.permute.xlu0 0
        %1638 = vperm.xlu0 %1637, %v1628
        %v1639 = vpop.permute.xlu0 %1638
        %1642 = vset.pattern.permute.xlu0 0
        %1643 = vperm.xlu0 %1642, %v1629
        %v1644 = vpop.permute.xlu0 %1643
        %1647 = vset.pattern.permute.xlu0 0
        %1648 = vperm.xlu0 %1647, %v1630
        %v1649 = vpop.permute.xlu0 %1648
        %v1651 = vadd.f32 %v1623, %v1634
        %v1652 = vadd.f32 %v1624, %v1639
        %v1653 = vadd.f32 %v1625, %v1644
        %v1654 = vadd.f32 %v1626, %v1649
        %v1655 = vmax.f32 %v1651, 0.0
        %v1656 = vmax.f32 %v1652, 0.0
        %v1657 = vmax.f32 %v1653, 0.0
        %v1658 = vmax.f32 %v1654, 0.0
        %v1659 = vadd.f32 %v828, %v1655
        %v1660 = vadd.f32 %v833, %v1656
        %v1661 = vadd.f32 %v838, %v1657
        %v1662 = vadd.f32 %v843, %v1658
        %s1663 = scalar_lea.vmem [#allocation19], 64
        %v1664 = vld [vmem:[%s1663] sm:$0xff]
        %v1665 = vld [vmem:[%s1663 + $0x8] sm:$0xff]
        %v1666 = vld [vmem:[%s1663 + $0x10] sm:$0xff]
        %v1667 = vld [vmem:[%s1663 + $0x18] sm:$0xff]
        %v1668 = vld [vmem:[%s1663 + $0x20] sm:$0xff]
        %v1669 = vld [vmem:[%s1663 + $0x28] sm:$0xff]
        %v1670 = vld [vmem:[%s1663 + $0x30] sm:$0xff]
        %v1671 = vld [vmem:[%s1663 + $0x38] sm:$0xff]
        %v1673 = vsel %vm1129, %v1664, 0
        %v1676 = vsel %vm1129, %v1665, 0
        %v1679 = vsel %vm1129, %v1666, 0
        %v1682 = vsel %vm1129, %v1667, 0
        %v1685 = vsel %vm1129, %v1668, 0
        %v1688 = vsel %vm1129, %v1669, 0
        %v1691 = vsel %vm1129, %v1670, 0
        %v1694 = vsel %vm1129, %v1671, 0
        %1696 = vmatprep.subr.mxu0 0.0
        %1697 = vmatpush1.msra.mxu0 %v1659
        %1698 = vmatprep.subr.mxu0 0.0
        %1699 = vmatpush1.msra.mxu0 %v1660
        %1700 = vmatprep.subr.mxu0 0.0
        %1701 = vmatpush1.msra.mxu0 %v1661
        %1702 = vmatprep.subr.mxu0 0.0
        %1703 = vmatpush1.msra.mxu0 %v1662
        %1704 = vmatprep.subr.mxu0 0.0
        %1705 = vmatpush1.msra.mxu0 0.0
        %1706 = vmatprep.subr.mxu0 0.0
        %1707 = vmatpush1.msra.mxu0 0.0
        %1708 = vmatprep.subr.mxu0 0.0
        %1709 = vmatpush1.msra.mxu0 0.0
        %1710 = vmatprep.subr.mxu0 0.0
        %1711 = vmatpush1.msra.mxu0 0.0
        %1712 = vmatprep.subr.mxu0 0.0
        %1713 = vmatpush1.msra.mxu0 0.0
        %1714 = vmatprep.subr.mxu0 0.0
        %1715 = vmatpush1.msra.mxu0 0.0
        %1716 = vmatprep.subr.mxu0 0.0
        %1717 = vmatpush1.msra.mxu0 0.0
        %1718 = vmatprep.subr.mxu0 0.0
        %1719 = vmatpush1.msra.mxu0 0.0
        %1720 = vmatprep.subr.mxu0 0.0
        %1721 = vmatpush1.msra.mxu0 0.0
        %1722 = vmatprep.subr.mxu0 0.0
        %1723 = vmatpush1.msra.mxu0 0.0
        %1724 = vmatprep.subr.mxu0 0.0
        %1725 = vmatpush1.msra.mxu0 0.0
        %1726 = vmatprep.subr.mxu0 0.0
        %1727 = vmatpush1.msra.mxu0 0.0
        %1728 = vmatprep.subr.mxu0 0.0
        %1729 = vmatpush1.msra.mxu0 0.0
        %1730 = vmatprep.subr.mxu0 0.0
        %1731 = vmatpush1.msra.mxu0 0.0
        %1732 = vmatprep.subr.mxu0 0.0
        %1733 = vmatpush1.msra.mxu0 0.0
        %1734 = vmatprep.subr.mxu0 0.0
        %1735 = vmatpush1.msra.mxu0 0.0
        %1736 = vmatprep.subr.mxu0 0.0
        %1737 = vmatpush1.msra.mxu0 0.0
        %1738 = vmatprep.subr.mxu0 0.0
        %1739 = vmatpush1.msra.mxu0 0.0
        %1740 = vmatprep.subr.mxu0 0.0
        %1741 = vmatpush1.msra.mxu0 0.0
        %1742 = vmatprep.subr.mxu0 0.0
        %1743 = vmatpush1.msra.mxu0 0.0
        %1744 = vmatprep.subr.mxu0 0.0
        %1745 = vmatpush1.msra.mxu0 0.0
        %1746 = vmatprep.subr.mxu0 0.0
        %1747 = vmatpush1.msra.mxu0 0.0
        %1748 = vmatprep.subr.mxu0 0.0
        %1749 = vmatpush1.msra.mxu0 0.0
        %1750 = vmatprep.subr.mxu0 0.0
        %1751 = vmatpush1.msra.mxu0 0.0
        %1752 = vmatprep.subr.mxu0 0.0
        %1753 = vmatpush1.msra.mxu0 0.0
        %1754 = vmatprep.subr.mxu0 0.0
        %1755 = vmatpush1.msra.mxu0 0.0
        %1756 = vmatprep.subr.mxu0 0.0
        %1757 = vmatpush1.msra.mxu0 0.0
        %1758 = vmatprep.subr.mxu0 0.0
        %1759 = vmatpush1.msra.mxu0 0.0
        %1760 = vmatprep.mubr.f32.mxu0 0.0
        %1761 = vmatmul.mubr.f32.gmra.mrb[0].mxu0 %v1673
        %v1762 = vpop.f32.mrb[0].mxu0
        %v1763 = vadd.f32 0.0, %v1762
        %v1764 = vpop.f32.mrb[0].mxu0
        %1765 = vmatprep.mubr.f32.mxu0 0.0
        %1766 = vmatmul.mubr.f32.gmra.mrb[0].mxu0 %v1676
        %v1767 = vpop.f32.mrb[0].mxu0
        %v1768 = vadd.f32 0.0, %v1767
        %v1769 = vpop.f32.mrb[0].mxu0
        %1770 = vmatprep.mubr.f32.mxu0 0.0
        %1771 = vmatmul.mubr.f32.gmra.mrb[0].mxu0 %v1679
        %v1772 = vpop.f32.mrb[0].mxu0
        %v1773 = vadd.f32 0.0, %v1772
        %v1774 = vpop.f32.mrb[0].mxu0
        %1775 = vmatprep.mubr.f32.mxu0 0.0
        %1776 = vmatmul.mubr.f32.gmra.mrb[0].mxu0 %v1682
        %v1777 = vpop.f32.mrb[0].mxu0
        %v1778 = vadd.f32 0.0, %v1777
        %v1779 = vpop.f32.mrb[0].mxu0
        %1780 = vmatprep.mubr.f32.mxu0 0.0
        %1781 = vmatmul.mubr.f32.gmra.mrb[0].mxu0 %v1685
        %v1782 = vpop.f32.mrb[0].mxu0
        %v1783 = vadd.f32 0.0, %v1782
        %v1784 = vpop.f32.mrb[0].mxu0
        %1785 = vmatprep.mubr.f32.mxu0 0.0
        %1786 = vmatmul.mubr.f32.gmra.mrb[0].mxu0 %v1688
        %v1787 = vpop.f32.mrb[0].mxu0
        %v1788 = vadd.f32 0.0, %v1787
        %v1789 = vpop.f32.mrb[0].mxu0
        %1790 = vmatprep.mubr.f32.mxu0 0.0
        %1791 = vmatmul.mubr.f32.gmra.mrb[0].mxu0 %v1691
        %v1792 = vpop.f32.mrb[0].mxu0
        %v1793 = vadd.f32 0.0, %v1792
        %v1794 = vpop.f32.mrb[0].mxu0
        %1795 = vmatprep.mubr.f32.mxu0 0.0
        %1796 = vmatmul.mubr.f32.gmra.mrb[0].mxu0 %v1694
        %v1797 = vpop.f32.mrb[0].mxu0
        %v1798 = vadd.f32 0.0, %v1797
        %v1799 = vpop.f32.mrb[0].mxu0
        %1800 = vdwg.mxu0
        %1805 = vrot.lane.b32.xlu0 %v1783, 64
        %v1806 = vpop.permute.xlu0 %1805
        %1807 = vrot.lane.b32.xlu0 %v1788, 64
        %v1808 = vpop.permute.xlu0 %1807
        %1809 = vrot.lane.b32.xlu0 %v1793, 64
        %v1810 = vpop.permute.xlu0 %1809
        %1811 = vrot.lane.b32.xlu0 %v1798, 64
        %v1812 = vpop.permute.xlu0 %1811
        %v1817 = vsel %vm1275, %v1763, %v1806
        %v1818 = vsel %vm1275, %v1768, %v1808
        %v1819 = vsel %vm1275, %v1773, %v1810
        %v1820 = vsel %vm1275, %v1778, %v1812
        %1821 = vmatprep.subr.mxu0 0.0
        %1822 = vmatpush1.msra.mxu0 %v854
        %1823 = vmatprep.subr.mxu0 0.0
        %1824 = vmatpush1.msra.mxu0 %v855
        %1825 = vmatprep.subr.mxu0 0.0
        %1826 = vmatpush1.msra.mxu0 %v856
        %1827 = vmatprep.subr.mxu0 0.0
        %1828 = vmatpush1.msra.mxu0 %v857
        %1829 = vmatprep.subr.mxu0 0.0
        %1830 = vmatpush1.msra.mxu0 %v858
        %1831 = vmatprep.subr.mxu0 0.0
        %1832 = vmatpush1.msra.mxu0 %v859
        %1833 = vmatprep.subr.mxu0 0.0
        %1834 = vmatpush1.msra.mxu0 %v860
        %1835 = vmatprep.subr.mxu0 0.0
        %1836 = vmatpush1.msra.mxu0 %v861
        %1837 = vmatprep.subr.mxu0 0.0
        %1838 = vmatpush1.msra.mxu0 %v862
        %1839 = vmatprep.subr.mxu0 0.0
        %1840 = vmatpush1.msra.mxu0 %v863
        %1841 = vmatprep.subr.mxu0 0.0
        %1842 = vmatpush1.msra.mxu0 %v864
        %1843 = vmatprep.subr.mxu0 0.0
        %1844 = vmatpush1.msra.mxu0 %v865
        %1845 = vmatprep.subr.mxu0 0.0
        %1846 = vmatpush1.msra.mxu0 %v866
        %1847 = vmatprep.subr.mxu0 0.0
        %1848 = vmatpush1.msra.mxu0 %v867
        %1849 = vmatprep.subr.mxu0 0.0
        %1850 = vmatpush1.msra.mxu0 %v868
        %1851 = vmatprep.subr.mxu0 0.0
        %1852 = vmatpush1.msra.mxu0 %v869
        %1853 = vmatprep.subr.mxu0 0.0
        %1854 = vmatpush1.msra.mxu0 0.0
        %1855 = vmatprep.subr.mxu0 0.0
        %1856 = vmatpush1.msra.mxu0 0.0
        %1857 = vmatprep.subr.mxu0 0.0
        %1858 = vmatpush1.msra.mxu0 0.0
        %1859 = vmatprep.subr.mxu0 0.0
        %1860 = vmatpush1.msra.mxu0 0.0
        %1861 = vmatprep.subr.mxu0 0.0
        %1862 = vmatpush1.msra.mxu0 0.0
        %1863 = vmatprep.subr.mxu0 0.0
        %1864 = vmatpush1.msra.mxu0 0.0
        %1865 = vmatprep.subr.mxu0 0.0
        %1866 = vmatpush1.msra.mxu0 0.0
        %1867 = vmatprep.subr.mxu0 0.0
        %1868 = vmatpush1.msra.mxu0 0.0
        %1869 = vmatprep.subr.mxu0 0.0
        %1870 = vmatpush1.msra.mxu0 0.0
        %1871 = vmatprep.subr.mxu0 0.0
        %1872 = vmatpush1.msra.mxu0 0.0
        %1873 = vmatprep.subr.mxu0 0.0
        %1874 = vmatpush1.msra.mxu0 0.0
        %1875 = vmatprep.subr.mxu0 0.0
        %1876 = vmatpush1.msra.mxu0 0.0
        %1877 = vmatprep.subr.mxu0 0.0
        %1878 = vmatpush1.msra.mxu0 0.0
        %1879 = vmatprep.subr.mxu0 0.0
        %1880 = vmatpush1.msra.mxu0 0.0
        %1881 = vmatprep.subr.mxu0 0.0
        %1882 = vmatpush1.msra.mxu0 0.0
        %1883 = vmatprep.subr.mxu0 0.0
        %1884 = vmatpush1.msra.mxu0 0.0
        %1885 = vmatprep.mubr.f32.mxu0 0.0
        %1886 = vmatmul.mubr.f32.gmra.mrb[0].mxu0 %v1817
        %v1887 = vpop.f32.mrb[0].mxu0
        %v1888 = vadd.f32 %v1083, %v1887
        %v1889 = vpop.f32.mrb[0].mxu0
        %1890 = vmatprep.mubr.f32.mxu0 0.0
        %1891 = vmatmul.mubr.f32.gmra.mrb[0].mxu0 %v1818
        %v1892 = vpop.f32.mrb[0].mxu0
        %v1893 = vadd.f32 %v1088, %v1892
        %v1894 = vpop.f32.mrb[0].mxu0
        %1895 = vmatprep.mubr.f32.mxu0 0.0
        %1896 = vmatmul.mubr.f32.gmra.mrb[0].mxu0 %v1819
        %v1897 = vpop.f32.mrb[0].mxu0
        %v1898 = vadd.f32 %v1093, %v1897
        %v1899 = vpop.f32.mrb[0].mxu0
        %1900 = vmatprep.mubr.f32.mxu0 0.0
        %1901 = vmatmul.mubr.f32.gmra.mrb[0].mxu0 %v1820
        %v1902 = vpop.f32.mrb[0].mxu0
        %v1903 = vadd.f32 %v1098, %v1902
        %v1904 = vpop.f32.mrb[0].mxu0
        %1905 = vdwg.mxu0
        %v1906 = vmax.f32 %v1888, 0.0
        %v1907 = vmax.f32 %v1893, 0.0
        %v1908 = vmax.f32 %v1898, 0.0
        %v1909 = vmax.f32 %v1903, 0.0
        %v1911 = vsel %vm1275, %v1659, 0
        %v1914 = vsel %vm1275, %v1660, 0
        %v1917 = vsel %vm1275, %v1661, 0
        %v1920 = vsel %vm1275, %v1662, 0
        %1922 = vmatprep.subr.mxu0 0.0
        %1923 = vmatpush1.msra.mxu0 %v846
        %1924 = vmatprep.subr.mxu0 0.0
        %1925 = vmatpush1.msra.mxu0 %v847
        %1926 = vmatprep.subr.mxu0 0.0
        %1927 = vmatpush1.msra.mxu0 %v848
        %1928 = vmatprep.subr.mxu0 0.0
        %1929 = vmatpush1.msra.mxu0 %v849
        %1930 = vmatprep.subr.mxu0 0.0
        %1931 = vmatpush1.msra.mxu0 %v850
        %1932 = vmatprep.subr.mxu0 0.0
        %1933 = vmatpush1.msra.mxu0 %v851
        %1934 = vmatprep.subr.mxu0 0.0
        %1935 = vmatpush1.msra.mxu0 %v852
        %1936 = vmatprep.subr.mxu0 0.0
        %1937 = vmatpush1.msra.mxu0 %v853
        %1938 = vmatprep.subr.mxu0 0.0
        %1939 = vmatpush1.msra.mxu0 0.0
        %1940 = vmatprep.subr.mxu0 0.0
        %1941 = vmatpush1.msra.mxu0 0.0
        %1942 = vmatprep.subr.mxu0 0.0
        %1943 = vmatpush1.msra.mxu0 0.0
        %1944 = vmatprep.subr.mxu0 0.0
        %1945 = vmatpush1.msra.mxu0 0.0
        %1946 = vmatprep.subr.mxu0 0.0
        %1947 = vmatpush1.msra.mxu0 0.0
        %1948 = vmatprep.subr.mxu0 0.0
        %1949 = vmatpush1.msra.mxu0 0.0
        %1950 = vmatprep.subr.mxu0 0.0
        %1951 = vmatpush1.msra.mxu0 0.0
        %1952 = vmatprep.subr.mxu0 0.0
        %1953 = vmatpush1.msra.mxu0 0.0
        %1954 = vmatprep.subr.mxu0 0.0
        %1955 = vmatpush1.msra.mxu0 0.0
        %1956 = vmatprep.subr.mxu0 0.0
        %1957 = vmatpush1.msra.mxu0 0.0
        %1958 = vmatprep.subr.mxu0 0.0
        %1959 = vmatpush1.msra.mxu0 0.0
        %1960 = vmatprep.subr.mxu0 0.0
        %1961 = vmatpush1.msra.mxu0 0.0
        %1962 = vmatprep.subr.mxu0 0.0
        %1963 = vmatpush1.msra.mxu0 0.0
        %1964 = vmatprep.subr.mxu0 0.0
        %1965 = vmatpush1.msra.mxu0 0.0
        %1966 = vmatprep.subr.mxu0 0.0
        %1967 = vmatpush1.msra.mxu0 0.0
        %1968 = vmatprep.subr.mxu0 0.0
        %1969 = vmatpush1.msra.mxu0 0.0
        %1970 = vmatprep.subr.mxu0 0.0
        %1971 = vmatpush1.msra.mxu0 0.0
        %1972 = vmatprep.subr.mxu0 0.0
        %1973 = vmatpush1.msra.mxu0 0.0
        %1974 = vmatprep.subr.mxu0 0.0
        %1975 = vmatpush1.msra.mxu0 0.0
        %1976 = vmatprep.subr.mxu0 0.0
        %1977 = vmatpush1.msra.mxu0 0.0
        %1978 = vmatprep.subr.mxu0 0.0
        %1979 = vmatpush1.msra.mxu0 0.0
        %1980 = vmatprep.subr.mxu0 0.0
        %1981 = vmatpush1.msra.mxu0 0.0
        %1982 = vmatprep.subr.mxu0 0.0
        %1983 = vmatpush1.msra.mxu0 0.0
        %1984 = vmatprep.subr.mxu0 0.0
        %1985 = vmatpush1.msra.mxu0 0.0
        %1986 = vmatprep.mubr.f32.mxu0 0.0
        %1987 = vmatmul.mubr.f32.gmra.mrb[0].mxu0 %v1911
        %v1988 = vpop.f32.mrb[0].mxu0
        %v1989 = vadd.f32 0.0, %v1988
        %v1990 = vpop.f32.mrb[0].mxu0
        %1991 = vmatprep.mubr.f32.mxu0 0.0
        %1992 = vmatmul.mubr.f32.gmra.mrb[0].mxu0 %v1914
        %v1993 = vpop.f32.mrb[0].mxu0
        %v1994 = vadd.f32 0.0, %v1993
        %v1995 = vpop.f32.mrb[0].mxu0
        %1996 = vmatprep.mubr.f32.mxu0 0.0
        %1997 = vmatmul.mubr.f32.gmra.mrb[0].mxu0 %v1917
        %v1998 = vpop.f32.mrb[0].mxu0
        %v1999 = vadd.f32 0.0, %v1998
        %v2000 = vpop.f32.mrb[0].mxu0
        %2001 = vmatprep.mubr.f32.mxu0 0.0
        %2002 = vmatmul.mubr.f32.gmra.mrb[0].mxu0 %v1920
        %v2003 = vpop.f32.mrb[0].mxu0
        %v2004 = vadd.f32 0.0, %v2003
        %v2005 = vpop.f32.mrb[0].mxu0
        %2006 = vdwg.mxu0
        %v2007 = vadd.f32 %v1659, %v1989
        %v2008 = vadd.f32 %v1660, %v1994
        %v2009 = vadd.f32 %v1661, %v1999
        %v2010 = vadd.f32 %v1662, %v2004
        %s2011 = scalar_lea.vmem [#allocation13], 32
        %v2012 = vld [vmem:[%s2011] sm:$0xff]
        %v2013 = vld [vmem:[%s2011 + $0x8] sm:$0xff]
        %v2014 = vld [vmem:[%s2011 + $0x10] sm:$0xff]
        %v2015 = vld [vmem:[%s2011 + $0x18] sm:$0xff]
        %s2016 = scalar_lea.vmem [#allocation14], 32
        %v2017 = vld [vmem:[%s2016] sm:$0xff]
        %v2018 = vld [vmem:[%s2016 + $0x8] sm:$0xff]
        %v2019 = vld [vmem:[%s2016 + $0x10] sm:$0xff]
        %v2020 = vld [vmem:[%s2016 + $0x18] sm:$0xff]
        %2022 = vset.pattern.permute.xlu0 0
        %2023 = vperm.xlu0 %2022, %v2017
        %v2024 = vpop.permute.xlu0 %2023
        %2027 = vset.pattern.permute.xlu0 0
        %2028 = vperm.xlu0 %2027, %v2018
        %v2029 = vpop.permute.xlu0 %2028
        %2032 = vset.pattern.permute.xlu0 0
        %2033 = vperm.xlu0 %2032, %v2019
        %v2034 = vpop.permute.xlu0 %2033
        %2037 = vset.pattern.permute.xlu0 0
        %2038 = vperm.xlu0 %2037, %v2020
        %v2039 = vpop.permute.xlu0 %2038
        %v2042 = vsel %vm1129, %v2012, 0
        %v2045 = vsel %vm1129, %v2013, 0
        %v2048 = vsel %vm1129, %v2014, 0
        %v2051 = vsel %vm1129, %v2015, 0
        %2053 = vmatprep.subr.mxu0 0.0
        %2054 = vmatpush1.msra.mxu0 %v2007
        %2055 = vmatprep.subr.mxu0 0.0
        %2056 = vmatpush1.msra.mxu0 %v2008
        %2057 = vmatprep.subr.mxu0 0.0
        %2058 = vmatpush1.msra.mxu0 %v2009
        %2059 = vmatprep.subr.mxu0 0.0
        %2060 = vmatpush1.msra.mxu0 %v2010
        %2061 = vmatprep.subr.mxu0 0.0
        %2062 = vmatpush1.msra.mxu0 0.0
        %2063 = vmatprep.subr.mxu0 0.0
        %2064 = vmatpush1.msra.mxu0 0.0
        %2065 = vmatprep.subr.mxu0 0.0
        %2066 = vmatpush1.msra.mxu0 0.0
        %2067 = vmatprep.subr.mxu0 0.0
        %2068 = vmatpush1.msra.mxu0 0.0
        %2069 = vmatprep.subr.mxu0 0.0
        %2070 = vmatpush1.msra.mxu0 0.0
        %2071 = vmatprep.subr.mxu0 0.0
        %2072 = vmatpush1.msra.mxu0 0.0
        %2073 = vmatprep.subr.mxu0 0.0
        %2074 = vmatpush1.msra.mxu0 0.0
        %2075 = vmatprep.subr.mxu0 0.0
        %2076 = vmatpush1.msra.mxu0 0.0
        %2077 = vmatprep.subr.mxu0 0.0
        %2078 = vmatpush1.msra.mxu0 0.0
        %2079 = vmatprep.subr.mxu0 0.0
        %2080 = vmatpush1.msra.mxu0 0.0
        %2081 = vmatprep.subr.mxu0 0.0
        %2082 = vmatpush1.msra.mxu0 0.0
        %2083 = vmatprep.subr.mxu0 0.0
        %2084 = vmatpush1.msra.mxu0 0.0
        %2085 = vmatprep.subr.mxu0 0.0
        %2086 = vmatpush1.msra.mxu0 0.0
        %2087 = vmatprep.subr.mxu0 0.0
        %2088 = vmatpush1.msra.mxu0 0.0
        %2089 = vmatprep.subr.mxu0 0.0
        %2090 = vmatpush1.msra.mxu0 0.0
        %2091 = vmatprep.subr.mxu0 0.0
        %2092 = vmatpush1.msra.mxu0 0.0
        %2093 = vmatprep.subr.mxu0 0.0
        %2094 = vmatpush1.msra.mxu0 0.0
        %2095 = vmatprep.subr.mxu0 0.0
        %2096 = vmatpush1.msra.mxu0 0.0
        %2097 = vmatprep.subr.mxu0 0.0
        %2098 = vmatpush1.msra.mxu0 0.0
        %2099 = vmatprep.subr.mxu0 0.0
        %2100 = vmatpush1.msra.mxu0 0.0
        %2101 = vmatprep.subr.mxu0 0.0
        %2102 = vmatpush1.msra.mxu0 0.0
        %2103 = vmatprep.subr.mxu0 0.0
        %2104 = vmatpush1.msra.mxu0 0.0
        %2105 = vmatprep.subr.mxu0 0.0
        %2106 = vmatpush1.msra.mxu0 0.0
        %2107 = vmatprep.subr.mxu0 0.0
        %2108 = vmatpush1.msra.mxu0 0.0
        %2109 = vmatprep.subr.mxu0 0.0
        %2110 = vmatpush1.msra.mxu0 0.0
        %2111 = vmatprep.subr.mxu0 0.0
        %2112 = vmatpush1.msra.mxu0 0.0
        %2113 = vmatprep.subr.mxu0 0.0
        %2114 = vmatpush1.msra.mxu0 0.0
        %2115 = vmatprep.subr.mxu0 0.0
        %2116 = vmatpush1.msra.mxu0 0.0
        %2117 = vmatprep.mubr.f32.mxu0 0.0
        %2118 = vmatmul.mubr.f32.gmra.mrb[0].mxu0 %v2042
        %v2119 = vpop.f32.mrb[0].mxu0
        %v2120 = vadd.f32 %v2024, %v2119
        %v2121 = vpop.f32.mrb[0].mxu0
        %2122 = vmatprep.mubr.f32.mxu0 0.0
        %2123 = vmatmul.mubr.f32.gmra.mrb[0].mxu0 %v2045
        %v2124 = vpop.f32.mrb[0].mxu0
        %v2125 = vadd.f32 %v2029, %v2124
        %v2126 = vpop.f32.mrb[0].mxu0
        %2127 = vmatprep.mubr.f32.mxu0 0.0
        %2128 = vmatmul.mubr.f32.gmra.mrb[0].mxu0 %v2048
        %v2129 = vpop.f32.mrb[0].mxu0
        %v2130 = vadd.f32 %v2034, %v2129
        %v2131 = vpop.f32.mrb[0].mxu0
        %2132 = vmatprep.mubr.f32.mxu0 0.0
        %2133 = vmatmul.mubr.f32.gmra.mrb[0].mxu0 %v2051
        %v2134 = vpop.f32.mrb[0].mxu0
        %v2135 = vadd.f32 %v2039, %v2134
        %v2136 = vpop.f32.mrb[0].mxu0
        %2137 = vdwg.mxu0
        %v2138 = vmax.f32 %v2120, 0.0
        %v2139 = vmax.f32 %v2125, 0.0
        %v2140 = vmax.f32 %v2130, 0.0
        %v2141 = vmax.f32 %v2135, 0.0
        %s2142 = scalar_lea.vmem [#allocation16], 32
        %v2143 = vld [vmem:[%s2142] sm:$0xff]
        %v2144 = vld [vmem:[%s2142 + $0x8] sm:$0xff]
        %v2145 = vld [vmem:[%s2142 + $0x10] sm:$0xff]
        %v2146 = vld [vmem:[%s2142 + $0x18] sm:$0xff]
        %2148 = vset.pattern.permute.xlu0 0
        %2149 = vperm.xlu0 %2148, %v2143
        %v2150 = vpop.permute.xlu0 %2149
        %2153 = vset.pattern.permute.xlu0 0
        %2154 = vperm.xlu0 %2153, %v2144
        %v2155 = vpop.permute.xlu0 %2154
        %2158 = vset.pattern.permute.xlu0 0
        %2159 = vperm.xlu0 %2158, %v2145
        %v2160 = vpop.permute.xlu0 %2159
        %2163 = vset.pattern.permute.xlu0 0
        %2164 = vperm.xlu0 %2163, %v2146
        %v2165 = vpop.permute.xlu0 %2164
        %v2167 = vmul.f32 %v2138, %v2150
        %v2168 = vmul.f32 %v2139, %v2155
        %v2169 = vmul.f32 %v2140, %v2160
        %v2170 = vmul.f32 %v2141, %v2165
        %s2171 = scalar_lea.vmem [#allocation17], 32
        %v2172 = vld [vmem:[%s2171] sm:$0xff]
        %v2173 = vld [vmem:[%s2171 + $0x8] sm:$0xff]
        %v2174 = vld [vmem:[%s2171 + $0x10] sm:$0xff]
        %v2175 = vld [vmem:[%s2171 + $0x18] sm:$0xff]
        %2177 = vset.pattern.permute.xlu0 0
        %2178 = vperm.xlu0 %2177, %v2172
        %v2179 = vpop.permute.xlu0 %2178
        %2182 = vset.pattern.permute.xlu0 0
        %2183 = vperm.xlu0 %2182, %v2173
        %v2184 = vpop.permute.xlu0 %2183
        %2187 = vset.pattern.permute.xlu0 0
        %2188 = vperm.xlu0 %2187, %v2174
        %v2189 = vpop.permute.xlu0 %2188
        %2192 = vset.pattern.permute.xlu0 0
        %2193 = vperm.xlu0 %2192, %v2175
        %v2194 = vpop.permute.xlu0 %2193
        %v2196 = vadd.f32 %v2167, %v2179
        %v2197 = vadd.f32 %v2168, %v2184
        %v2198 = vadd.f32 %v2169, %v2189
        %v2199 = vadd.f32 %v2170, %v2194
        %v2200 = vmax.f32 %v2196, 0.0
        %v2201 = vmax.f32 %v2197, 0.0
        %v2202 = vmax.f32 %v2198, 0.0
        %v2203 = vmax.f32 %v2199, 0.0
        %v2204 = vadd.f32 %v1659, %v2200
        %v2205 = vadd.f32 %v1660, %v2201
        %v2206 = vadd.f32 %v1661, %v2202
        %v2207 = vadd.f32 %v1662, %v2203
        %s2208 = scalar_lea.vmem [#allocation19], 128
        %v2209 = vld [vmem:[%s2208] sm:$0xff]
        %v2210 = vld [vmem:[%s2208 + $0x8] sm:$0xff]
        %v2211 = vld [vmem:[%s2208 + $0x10] sm:$0xff]
        %v2212 = vld [vmem:[%s2208 + $0x18] sm:$0xff]
        %v2213 = vld [vmem:[%s2208 + $0x20] sm:$0xff]
        %v2214 = vld [vmem:[%s2208 + $0x28] sm:$0xff]
        %v2215 = vld [vmem:[%s2208 + $0x30] sm:$0xff]
        %v2216 = vld [vmem:[%s2208 + $0x38] sm:$0xff]
        %v2218 = vsel %vm1129, %v2209, 0
        %v2221 = vsel %vm1129, %v2210, 0
        %v2224 = vsel %vm1129, %v2211, 0
        %v2227 = vsel %vm1129, %v2212, 0
        %v2230 = vsel %vm1129, %v2213, 0
        %v2233 = vsel %vm1129, %v2214, 0
        %v2236 = vsel %vm1129, %v2215, 0
        %v2239 = vsel %vm1129, %v2216, 0
        %2241 = vmatprep.subr.mxu0 0.0
        %2242 = vmatpush1.msra.mxu0 %v2204
        %2243 = vmatprep.subr.mxu0 0.0
        %2244 = vmatpush1.msra.mxu0 %v2205
        %2245 = vmatprep.subr.mxu0 0.0
        %2246 = vmatpush1.msra.mxu0 %v2206
        %2247 = vmatprep.subr.mxu0 0.0
        %2248 = vmatpush1.msra.mxu0 %v2207
        %2249 = vmatprep.subr.mxu0 0.0
        %2250 = vmatpush1.msra.mxu0 0.0
        %2251 = vmatprep.subr.mxu0 0.0
        %2252 = vmatpush1.msra.mxu0 0.0
        %2253 = vmatprep.subr.mxu0 0.0
        %2254 = vmatpush1.msra.mxu0 0.0
        %2255 = vmatprep.subr.mxu0 0.0
        %2256 = vmatpush1.msra.mxu0 0.0
        %2257 = vmatprep.subr.mxu0 0.0
        %2258 = vmatpush1.msra.mxu0 0.0
        %2259 = vmatprep.subr.mxu0 0.0
        %2260 = vmatpush1.msra.mxu0 0.0
        %2261 = vmatprep.subr.mxu0 0.0
        %2262 = vmatpush1.msra.mxu0 0.0
        %2263 = vmatprep.subr.mxu0 0.0
        %2264 = vmatpush1.msra.mxu0 0.0
        %2265 = vmatprep.subr.mxu0 0.0
        %2266 = vmatpush1.msra.mxu0 0.0
        %2267 = vmatprep.subr.mxu0 0.0
        %2268 = vmatpush1.msra.mxu0 0.0
        %2269 = vmatprep.subr.mxu0 0.0
        %2270 = vmatpush1.msra.mxu0 0.0
        %2271 = vmatprep.subr.mxu0 0.0
        %2272 = vmatpush1.msra.mxu0 0.0
        %2273 = vmatprep.subr.mxu0 0.0
        %2274 = vmatpush1.msra.mxu0 0.0
        %2275 = vmatprep.subr.mxu0 0.0
        %2276 = vmatpush1.msra.mxu0 0.0
        %2277 = vmatprep.subr.mxu0 0.0
        %2278 = vmatpush1.msra.mxu0 0.0
        %2279 = vmatprep.subr.mxu0 0.0
        %2280 = vmatpush1.msra.mxu0 0.0
        %2281 = vmatprep.subr.mxu0 0.0
        %2282 = vmatpush1.msra.mxu0 0.0
        %2283 = vmatprep.subr.mxu0 0.0
        %2284 = vmatpush1.msra.mxu0 0.0
        %2285 = vmatprep.subr.mxu0 0.0
        %2286 = vmatpush1.msra.mxu0 0.0
        %2287 = vmatprep.subr.mxu0 0.0
        %2288 = vmatpush1.msra.mxu0 0.0
        %2289 = vmatprep.subr.mxu0 0.0
        %2290 = vmatpush1.msra.mxu0 0.0
        %2291 = vmatprep.subr.mxu0 0.0
        %2292 = vmatpush1.msra.mxu0 0.0
        %2293 = vmatprep.subr.mxu0 0.0
        %2294 = vmatpush1.msra.mxu0 0.0
        %2295 = vmatprep.subr.mxu0 0.0
        %2296 = vmatpush1.msra.mxu0 0.0
        %2297 = vmatprep.subr.mxu0 0.0
        %2298 = vmatpush1.msra.mxu0 0.0
        %2299 = vmatprep.subr.mxu0 0.0
        %2300 = vmatpush1.msra.mxu0 0.0
        %2301 = vmatprep.subr.mxu0 0.0
        %2302 = vmatpush1.msra.mxu0 0.0
        %2303 = vmatprep.subr.mxu0 0.0
        %2304 = vmatpush1.msra.mxu0 0.0
        %2305 = vmatprep.mubr.f32.mxu0 0.0
        %2306 = vmatmul.mubr.f32.gmra.mrb[0].mxu0 %v2218
        %v2307 = vpop.f32.mrb[0].mxu0
        %v2308 = vadd.f32 0.0, %v2307
        %v2309 = vpop.f32.mrb[0].mxu0
        %2310 = vmatprep.mubr.f32.mxu0 0.0
        %2311 = vmatmul.mubr.f32.gmra.mrb[0].mxu0 %v2221
        %v2312 = vpop.f32.mrb[0].mxu0
        %v2313 = vadd.f32 0.0, %v2312
        %v2314 = vpop.f32.mrb[0].mxu0
        %2315 = vmatprep.mubr.f32.mxu0 0.0
        %2316 = vmatmul.mubr.f32.gmra.mrb[0].mxu0 %v2224
        %v2317 = vpop.f32.mrb[0].mxu0
        %v2318 = vadd.f32 0.0, %v2317
        %v2319 = vpop.f32.mrb[0].mxu0
        %2320 = vmatprep.mubr.f32.mxu0 0.0
        %2321 = vmatmul.mubr.f32.gmra.mrb[0].mxu0 %v2227
        %v2322 = vpop.f32.mrb[0].mxu0
        %v2323 = vadd.f32 0.0, %v2322
        %v2324 = vpop.f32.mrb[0].mxu0
        %2325 = vmatprep.mubr.f32.mxu0 0.0
        %2326 = vmatmul.mubr.f32.gmra.mrb[0].mxu0 %v2230
        %v2327 = vpop.f32.mrb[0].mxu0
        %v2328 = vadd.f32 0.0, %v2327
        %v2329 = vpop.f32.mrb[0].mxu0
        %2330 = vmatprep.mubr.f32.mxu0 0.0
        %2331 = vmatmul.mubr.f32.gmra.mrb[0].mxu0 %v2233
        %v2332 = vpop.f32.mrb[0].mxu0
        %v2333 = vadd.f32 0.0, %v2332
        %v2334 = vpop.f32.mrb[0].mxu0
        %2335 = vmatprep.mubr.f32.mxu0 0.0
        %2336 = vmatmul.mubr.f32.gmra.mrb[0].mxu0 %v2236
        %v2337 = vpop.f32.mrb[0].mxu0
        %v2338 = vadd.f32 0.0, %v2337
        %v2339 = vpop.f32.mrb[0].mxu0
        %2340 = vmatprep.mubr.f32.mxu0 0.0
        %2341 = vmatmul.mubr.f32.gmra.mrb[0].mxu0 %v2239
        %v2342 = vpop.f32.mrb[0].mxu0
        %v2343 = vadd.f32 0.0, %v2342
        %v2344 = vpop.f32.mrb[0].mxu0
        %2345 = vdwg.mxu0
        %2350 = vrot.lane.b32.xlu0 %v2328, 64
        %v2351 = vpop.permute.xlu0 %2350
        %2352 = vrot.lane.b32.xlu0 %v2333, 64
        %v2353 = vpop.permute.xlu0 %2352
        %2354 = vrot.lane.b32.xlu0 %v2338, 64
        %v2355 = vpop.permute.xlu0 %2354
        %2356 = vrot.lane.b32.xlu0 %v2343, 64
        %v2357 = vpop.permute.xlu0 %2356
        %v2362 = vsel %vm1275, %v2308, %v2351
        %v2363 = vsel %vm1275, %v2313, %v2353
        %v2364 = vsel %vm1275, %v2318, %v2355
        %v2365 = vsel %vm1275, %v2323, %v2357
        %2366 = vmatprep.subr.mxu0 0.0
        %2367 = vmatpush1.msra.mxu0 %v854
        %2368 = vmatprep.subr.mxu0 0.0
        %2369 = vmatpush1.msra.mxu0 %v855
        %2370 = vmatprep.subr.mxu0 0.0
        %2371 = vmatpush1.msra.mxu0 %v856
        %2372 = vmatprep.subr.mxu0 0.0
        %2373 = vmatpush1.msra.mxu0 %v857
        %2374 = vmatprep.subr.mxu0 0.0
        %2375 = vmatpush1.msra.mxu0 %v858
        %2376 = vmatprep.subr.mxu0 0.0
        %2377 = vmatpush1.msra.mxu0 %v859
        %2378 = vmatprep.subr.mxu0 0.0
        %2379 = vmatpush1.msra.mxu0 %v860
        %2380 = vmatprep.subr.mxu0 0.0
        %2381 = vmatpush1.msra.mxu0 %v861
        %2382 = vmatprep.subr.mxu0 0.0
        %2383 = vmatpush1.msra.mxu0 %v862
        %2384 = vmatprep.subr.mxu0 0.0
        %2385 = vmatpush1.msra.mxu0 %v863
        %2386 = vmatprep.subr.mxu0 0.0
        %2387 = vmatpush1.msra.mxu0 %v864
        %2388 = vmatprep.subr.mxu0 0.0
        %2389 = vmatpush1.msra.mxu0 %v865
        %2390 = vmatprep.subr.mxu0 0.0
        %2391 = vmatpush1.msra.mxu0 %v866
        %2392 = vmatprep.subr.mxu0 0.0
        %2393 = vmatpush1.msra.mxu0 %v867
        %2394 = vmatprep.subr.mxu0 0.0
        %2395 = vmatpush1.msra.mxu0 %v868
        %2396 = vmatprep.subr.mxu0 0.0
        %2397 = vmatpush1.msra.mxu0 %v869
        %2398 = vmatprep.subr.mxu0 0.0
        %2399 = vmatpush1.msra.mxu0 0.0
        %2400 = vmatprep.subr.mxu0 0.0
        %2401 = vmatpush1.msra.mxu0 0.0
        %2402 = vmatprep.subr.mxu0 0.0
        %2403 = vmatpush1.msra.mxu0 0.0
        %2404 = vmatprep.subr.mxu0 0.0
        %2405 = vmatpush1.msra.mxu0 0.0
        %2406 = vmatprep.subr.mxu0 0.0
        %2407 = vmatpush1.msra.mxu0 0.0
        %2408 = vmatprep.subr.mxu0 0.0
        %2409 = vmatpush1.msra.mxu0 0.0
        %2410 = vmatprep.subr.mxu0 0.0
        %2411 = vmatpush1.msra.mxu0 0.0
        %2412 = vmatprep.subr.mxu0 0.0
        %2413 = vmatpush1.msra.mxu0 0.0
        %2414 = vmatprep.subr.mxu0 0.0
        %2415 = vmatpush1.msra.mxu0 0.0
        %2416 = vmatprep.subr.mxu0 0.0
        %2417 = vmatpush1.msra.mxu0 0.0
        %2418 = vmatprep.subr.mxu0 0.0
        %2419 = vmatpush1.msra.mxu0 0.0
        %2420 = vmatprep.subr.mxu0 0.0
        %2421 = vmatpush1.msra.mxu0 0.0
        %2422 = vmatprep.subr.mxu0 0.0
        %2423 = vmatpush1.msra.mxu0 0.0
        %2424 = vmatprep.subr.mxu0 0.0
        %2425 = vmatpush1.msra.mxu0 0.0
        %2426 = vmatprep.subr.mxu0 0.0
        %2427 = vmatpush1.msra.mxu0 0.0
        %2428 = vmatprep.subr.mxu0 0.0
        %2429 = vmatpush1.msra.mxu0 0.0
        %2430 = vmatprep.mubr.f32.mxu0 0.0
        %2431 = vmatmul.mubr.f32.gmra.mrb[0].mxu0 %v2362
        %v2432 = vpop.f32.mrb[0].mxu0
        %v2433 = vadd.f32 %v1103, %v2432
        %v2434 = vpop.f32.mrb[0].mxu0
        %2435 = vmatprep.mubr.f32.mxu0 0.0
        %2436 = vmatmul.mubr.f32.gmra.mrb[0].mxu0 %v2363
        %v2437 = vpop.f32.mrb[0].mxu0
        %v2438 = vadd.f32 %v1108, %v2437
        %v2439 = vpop.f32.mrb[0].mxu0
        %2440 = vmatprep.mubr.f32.mxu0 0.0
        %2441 = vmatmul.mubr.f32.gmra.mrb[0].mxu0 %v2364
        %v2442 = vpop.f32.mrb[0].mxu0
        %v2443 = vadd.f32 %v1113, %v2442
        %v2444 = vpop.f32.mrb[0].mxu0
        %2445 = vmatprep.mubr.f32.mxu0 0.0
        %2446 = vmatmul.mubr.f32.gmra.mrb[0].mxu0 %v2365
        %v2447 = vpop.f32.mrb[0].mxu0
        %v2448 = vadd.f32 %v1118, %v2447
        %v2449 = vpop.f32.mrb[0].mxu0
        %2450 = vdwg.mxu0
        %v2451 = vmax.f32 %v2433, 0.0
        %v2452 = vmax.f32 %v2438, 0.0
        %v2453 = vmax.f32 %v2443, 0.0
        %v2454 = vmax.f32 %v2448, 0.0
        %v2455 = vld [vmem:[#allocation23] sm:$0x1]
        %v2456 = vld [vmem:[#allocation2] sm:$0x1]
        %2458 = vset.pattern.permute.xlu0 0
        %2459 = vperm.xlu0 %2458, %v2456
        %v2460 = vpop.permute.xlu0 %2459
        %v2462 = vlaneseq
        %v2463 = vshrl.u32 %v2462, 7
        %v2464 = vsub.s32 0, %v2463
        %v2465 = vrot.slane %v2460, %v2464
        %vm2466 = vcmask 785408
        %v2468 = vsel %vm2466, %v2455, 0
        %2470 = vmatprep.subr.mxu0 0.0
        %2471 = vmatpush1.msra.mxu0 %v1365
        %2472 = vmatprep.subr.mxu0 0.0
        %2473 = vmatpush1.msra.mxu0 %v1366
        %2474 = vmatprep.subr.mxu0 0.0
        %2475 = vmatpush1.msra.mxu0 %v1367
        %2476 = vmatprep.subr.mxu0 0.0
        %2477 = vmatpush1.msra.mxu0 %v1368
        %2478 = vmatprep.subr.mxu0 0.0
        %2479 = vmatpush1.msra.mxu0 %v1906
        %2480 = vmatprep.subr.mxu0 0.0
        %2481 = vmatpush1.msra.mxu0 %v1907
        %2482 = vmatprep.subr.mxu0 0.0
        %2483 = vmatpush1.msra.mxu0 %v1908
        %2484 = vmatprep.subr.mxu0 0.0
        %2485 = vmatpush1.msra.mxu0 %v1909
        %2486 = vmatprep.subr.mxu0 0.0
        %2487 = vmatpush1.msra.mxu0 %v2451
        %2488 = vmatprep.subr.mxu0 0.0
        %2489 = vmatpush1.msra.mxu0 %v2452
        %2490 = vmatprep.subr.mxu0 0.0
        %2491 = vmatpush1.msra.mxu0 %v2453
        %2492 = vmatprep.subr.mxu0 0.0
        %2493 = vmatpush1.msra.mxu0 %v2454
        %2494 = vmatprep.subr.mxu0 0.0
        %2495 = vmatpush1.msra.mxu0 0.0
        %2496 = vmatprep.subr.mxu0 0.0
        %2497 = vmatpush1.msra.mxu0 0.0
        %2498 = vmatprep.subr.mxu0 0.0
        %2499 = vmatpush1.msra.mxu0 0.0
        %2500 = vmatprep.subr.mxu0 0.0
        %2501 = vmatpush1.msra.mxu0 0.0
        %2502 = vmatprep.subr.mxu0 0.0
        %2503 = vmatpush1.msra.mxu0 0.0
        %2504 = vmatprep.subr.mxu0 0.0
        %2505 = vmatpush1.msra.mxu0 0.0
        %2506 = vmatprep.subr.mxu0 0.0
        %2507 = vmatpush1.msra.mxu0 0.0
        %2508 = vmatprep.subr.mxu0 0.0
        %2509 = vmatpush1.msra.mxu0 0.0
        %2510 = vmatprep.subr.mxu0 0.0
        %2511 = vmatpush1.msra.mxu0 0.0
        %2512 = vmatprep.subr.mxu0 0.0
        %2513 = vmatpush1.msra.mxu0 0.0
        %2514 = vmatprep.subr.mxu0 0.0
        %2515 = vmatpush1.msra.mxu0 0.0
        %2516 = vmatprep.subr.mxu0 0.0
        %2517 = vmatpush1.msra.mxu0 0.0
        %2518 = vmatprep.subr.mxu0 0.0
        %2519 = vmatpush1.msra.mxu0 0.0
        %2520 = vmatprep.subr.mxu0 0.0
        %2521 = vmatpush1.msra.mxu0 0.0
        %2522 = vmatprep.subr.mxu0 0.0
        %2523 = vmatpush1.msra.mxu0 0.0
        %2524 = vmatprep.subr.mxu0 0.0
        %2525 = vmatpush1.msra.mxu0 0.0
        %2526 = vmatprep.subr.mxu0 0.0
        %2527 = vmatpush1.msra.mxu0 0.0
        %2528 = vmatprep.subr.mxu0 0.0
        %2529 = vmatpush1.msra.mxu0 0.0
        %2530 = vmatprep.subr.mxu0 0.0
        %2531 = vmatpush1.msra.mxu0 0.0
        %2532 = vmatprep.subr.mxu0 0.0
        %2533 = vmatpush1.msra.mxu0 0.0
        %2534 = vmatprep.mubr.f32.mxu0 0.0
        %2535 = vmatmul.mubr.f32.gmra.mrb[0].mxu0 %v2468
        %v2536 = vpop.f32.mrb[0].mxu0
        %v2537 = vadd.f32 %v2465, %v2536
        %v2538 = vpop.f32.mrb[0].mxu0
        %2539 = vdwg.mxu0
        %v2540 = vmax.f32 %v2537, 0.0
        %2541 = vst [vmem:[%s714] sm:$0x1] %v2540
        %s2542 = sand.u32 %s371, 1
        %s2543 = scalar_lea.sflag [#allocation5], %s2542
        %s2544 = sand.u32 %s371, 1
        %s2545 = scalar_lea.vmem [#allocation25], %s2544
        // Predicated region
        $region137: #{tpu_custom_call.1} parent=79 // pred_check
          %p2546 = pneg %p381
        $region138: #{tpu_custom_call.1} parent=79 // pred_check_branch
          %2548 = sbr.rel (%p2546) target = $region140
        $region139: #{tpu_custom_call.1} parent=79 // pred_region
          %s2550 = ssub.s32 16, 16
          %2551 = vsyncadd %s2543, %s2550
          %s2552 = smul.addr %s38, 16
          %s2553 = scalar_lea.hbm %s15, %s2552
          %s2555 = sshll.u32 %s2545, 4
          %s2556 = int_to_ptr.vmem [resolvable:$true] %s2555
          %2558 = dma.vmem_to_hbm [thread:$0]  %s2556, 16, %s2553, %s2543
        $region140: #{tpu_custom_call.1} parent=79 // pred_fallthru
          _
      $region80: #{tpu_custom_call.1} parent=5 // pred_fallthru
        _
      %p2559 = scmp.le.s32.totalorder 2, %s33
      // Predicated region
      $region141: #{tpu_custom_call.1} parent=5 // pred_check
        %p2560 = pneg %p2559
      $region142: #{tpu_custom_call.1} parent=5 // pred_check_branch
        %2562 = sbr.rel (%p2560) target = $region144
      $region143: #{tpu_custom_call.1} parent=5 // pred_region
        %s2563 = ssub.s32 %s33, 2
        // Predicated region
        $region145: #{tpu_custom_call.1} parent=143 // pred_check
          %p2564 = pneg %p387
        $region146: #{tpu_custom_call.1} parent=143 // pred_check_branch
          %2566 = sbr.rel (%p2564) target = $region148
        $region147: #{tpu_custom_call.1} parent=143 // pred_region
          %s2567 = sand.u32 %s372, 1
          %s2568 = scalar_lea.sflag [#allocation5], %s2567
          %s2569 = sand.u32 %s372, 1
          %s2570 = scalar_lea.vmem [#allocation25], %s2569
          %2571 = dma.done %s2568, 16
        $region148: #{tpu_custom_call.1} parent=143 // pred_fallthru
          _
      $region144: #{tpu_custom_call.1} parent=5 // pred_fallthru
        _
    $region6: #{tpu_custom_call.1} parent=1 // loop_footer
      %s37 = sadd.s32 1, %s33
    $region7: #{tpu_custom_call.1} parent=1 // loop_footer_branch
      %32 = sbr.rel target = $region3
    $region8: #{tpu_custom_call.1} parent=1 // loop_exit
      _
    %2572 = vsyncpa [#allocation4], 1
    %s2573 = scalar_lea.sflag [#allocation4], 1
    %2574 = vsyncpa %s2573, 1
    %2575 = vsyncpa [#allocation7], 1
    %2576 = vsyncpa [#allocation12], 1
    %2577 = vsyncpa [#allocation15], 1
    %2578 = vsyncpa [#allocation18], 1
    %2579 = vsyncpa [#allocation21], 1
    %2580 = vsyncpa [#allocation24], 1
    %2581 = vsyncpa [#allocation5], 1
    %s2582 = scalar_lea.sflag [#allocation5], 1
    %2583 = vsyncpa %s2582, 1

</llo_original>
